<compile_context>
chip_gen: v7x
topology: tpu7x:2x2x1
jax: 0.10.0
libtpu: 0.0.40
codegen_flags: <defaults>
</compile_context>

<pallas_src>
import math

import jax
import jax.numpy as jnp
from jax.experimental import pallas as pl
from jax.experimental.pallas import tpu as pltpu

# ---- problem sizes (small, consistent with the module) ----
B = 2                                   # batch
L = 8                                   # sequence length
HIDDEN = 32                             # hidden_size
NUM_HEADS = 2
HEAD_DIM = HIDDEN // NUM_HEADS          # 16
MLP_RATIO = 4.0
MLP_HIDDEN = int(HIDDEN * MLP_RATIO)    # 128
EPS_LN = 1e-6
EPS_RMS = 1e-6

SLAB = 4 * HIDDEN                       # 128 lanes: [q(32) | k(32) | v(32) | pad(32)]
BL = B * L                              # 16 rows
LOG2_D = HEAD_DIM.bit_length() - 1      # 4
LOG2_L = L.bit_length() - 1             # 3
assert HEAD_DIM == 1 << LOG2_D and L == 1 << LOG2_L


# --------------------------------------------------------------------------
# Pallas kernel: full SingleStreamBlock forward, whole batch, one invocation
# --------------------------------------------------------------------------
def single_stream_kernel(x_ref, vec_ref, rope_ref, mod_w_ref, w1_ref, w2_ref,
                         bias_ref, out_ref):
    H, D, HID = NUM_HEADS, HEAD_DIM, HIDDEN

    x = x_ref[...]                                   # (BL, HID)

    # ---- packed biases (single DMA'd buffer) ----
    b1 = bias_ref[0:1, :]                            # (1, 256) linear1 bias (padded layout)
    mod_b = bias_ref[1:2, :3 * HID]                  # (1, 96)
    b2 = bias_ref[2:3, :HID]                         # (1, 32)

    # ---- modulation: one (B,HID)@(HID,3*HID) push, broadcast over L ----
    vec = vec_ref[...]                               # (B, HID)
    sv = vec * jax.nn.sigmoid(vec)                   # silu
    mod = jnp.dot(sv, mod_w_ref[...], preferred_element_type=jnp.float32) + mod_b
    mod_rows = jnp.concatenate(
        [jnp.broadcast_to(mod[b:b + 1, :], (L, 3 * HID)) for b in range(B)], axis=0)
    shift = mod_rows[:, 0:HID]
    scale = mod_rows[:, HID:2 * HID]
    gate = mod_rows[:, 2 * HID:3 * HID]

    # ---- pre_norm: LayerNorm (no affine, eps=1e-6) + modulation ----
    mu = jnp.mean(x, axis=-1, keepdims=True)
    xc = x - mu
    var = jnp.mean(xc * xc, axis=-1, keepdims=True)
    x_mod = (1.0 + scale) * (xc * jax.lax.rsqrt(var + EPS_LN)) + shift

    # ---- fused linear1: one (BL,32)@(32,256) push -> [qkv slab | mlp] ----
    h1 = jnp.dot(x_mod, w1_ref[...], preferred_element_type=jnp.float32) + b1
    qkv = h1[:, :SLAB]                               # (BL, 128) lane-tile aligned
    mlp = h1[:, SLAB:]                               # (BL, 128) lane-tile aligned

    # ---- RoPE on the whole q/k slab via two XLU lane rolls ----
    # The rope maps already carry the learned q/k RMSNorm scales and 1/sqrt(D)
    # (q lanes), and are exactly zero on v/pad lanes and pair boundaries.
    ra = jnp.concatenate([rope_ref[0]] * B, axis=0)  # (BL, 128)
    rp = jnp.concatenate([rope_ref[1]] * B, axis=0)
    rm = jnp.concatenate([rope_ref[2]] * B, axis=0)
    roped = (ra * qkv
             + pltpu.roll(qkv * rp, 1, 1)
             + pltpu.roll(qkv * rm, SLAB - 1, 1))

    # ---- q/k RMSNorm row factors, all heads & batches in one MXU push ----
    ri = jax.lax.broadcasted_iota(jnp.int32, (SLAB, SLAB), 0)
    ci = jax.lax.broadcasted_iota(jnp.int32, (SLAB, SLAB), 1)
    same_head = jnp.right_shift(ri, LOG2_D) == jnp.right_shift(ci, LOG2_D)
    seg = jnp.where(same_head & (ci < 2 * HID), 1.0 / D, 0.0).astype(jnp.float32)
    sos = jnp.dot(qkv * qkv, seg, preferred_element_type=jnp.float32)   # (BL, 128)
    qk = roped * jax.lax.rsqrt(sos + EPS_RMS)        # q/k lanes valid, v/pad stay 0

    # ---- MLP branch folded through linear2's mlp rows ----
    w2a = w2_ref[0:HID, :]                           # (HID, HID)  attn rows
    w2m = w2_ref[HID:, :]                            # (MLP, HID)  mlp rows
    mlp_act = jax.nn.gelu(mlp, approximate=True)     # GELU(tanh)
    acc = jnp.dot(mlp_act, w2m, preferred_element_type=jnp.float32) + b2  # (BL, HID)

    # ---- attention: batch merged via static block-diagonal mask ----
    rr = jax.lax.broadcasted_iota(jnp.int32, (BL, BL), 0)
    rc = jax.lax.broadcasted_iota(jnp.int32, (BL, BL), 1)
    bmask = jnp.where(jnp.right_shift(rr, LOG2_L) == jnp.right_shift(rc, LOG2_L),
                      0.0, -1e30).astype(jnp.float32)

    for h in range(H):                               # H=2, statically unrolled
        cq, ck, cv = h * D, HID + h * D, 2 * HID + h * D
        qh = qk[:, cq:cq + D]                        # already carries 1/sqrt(D)
        kh = qk[:, ck:ck + D]
        vh = qkv[:, cv:cv + D]

        # q @ k^T without an explicit transpose (contract last dims).
        s = jax.lax.dot_general(qh, kh, (((1,), (1,)), ((), ())),
                                preferred_element_type=jnp.float32) + bmask
        s = s - jnp.max(s, axis=-1, keepdims=True)
        e = jnp.exp(s)
        p = e / jnp.sum(e, axis=-1, keepdims=True)   # exact softmax normaliser
        o = jnp.dot(p, vh, preferred_element_type=jnp.float32)            # (BL, D)
        # fold per-head output straight through linear2's attn rows
        acc = acc + jnp.dot(o, w2a[cq:cq + D, :], preferred_element_type=jnp.float32)

    # ---- gated residual, single store ----
    out_ref[...] = x + gate * acc


# --------------------------------------------------------------------------
# One-time packing of weights / RoPE tables (hoisted out of the forward path)
# --------------------------------------------------------------------------
def pack_constants(params, pe):
    H, D, HID = NUM_HEADS, HEAD_DIM, HIDDEN
    sm_scale = 1.0 / math.sqrt(D)

    # RoPE 2x2 blocks -> three lane maps for the roll-based decomposition.
    f = pe[0, 0].astype(jnp.float32)                 # (L, D//2, 2, 2)
    z = jnp.zeros_like(f[..., 0, 0])
    rope_a = jnp.stack([f[..., 0, 0], f[..., 1, 1]], axis=-1).reshape(L, D)
    rope_p = jnp.stack([f[..., 1, 0], z], axis=-1).reshape(L, D)   # feeds roll(+1)
    rope_m = jnp.stack([z, f[..., 0, 1]], axis=-1).reshape(L, D)   # feeds roll(-1)

    # Per-lane scale: learned q scale * 1/sqrt(D) on q lanes, learned k scale
    # on k lanes, ZERO on v/pad lanes (the kernel's lane-roll invariant).
    qsc, ksc = params["q_scale"], params["k_scale"]                # (1, D)
    lane_scale = jnp.concatenate(
        [jnp.tile(qsc * sm_scale, (1, H)), jnp.tile(ksc, (1, H)),
         jnp.zeros((1, 2 * HID), jnp.float32)], axis=1)            # (1, 128)

    def to_slab(m):                                  # (L, D) -> (L, 128)
        return jnp.concatenate(
            [jnp.tile(m, (1, 2 * H)), jnp.zeros((L, 2 * HID), jnp.float32)],
            axis=1) * lane_scale

    rope_pack = jnp.stack([to_slab(rope_a), to_slab(rope_p), to_slab(rope_m)], axis=0)

    # linear1 repacked to [qkv(96) | pad(32) | mlp(128)] (128-lane aligned halves).
    w1, b1 = params["w1"], params["b1"]
    w1p = jnp.concatenate(
        [w1[:, :3 * HID], jnp.zeros((HID, HID), jnp.float32), w1[:, 3 * HID:]], axis=1)
    b1p = jnp.concatenate(
        [b1[:, :3 * HID], jnp.zeros((1, HID), jnp.float32), b1[:, 3 * HID:]], axis=1)

    # All small biases in one buffer -> single DMA.
    bias_pack = jnp.zeros((3, SLAB + MLP_HIDDEN), jnp.float32)     # (3, 256)
    bias_pack = bias_pack.at[0, :].set(b1p[0])
    bias_pack = bias_pack.at[1, :3 * HID].set(params["mod_b"][0])
    bias_pack = bias_pack.at[2, :HID].set(params["b2"][0])

    packed = {
        "rope_pack": rope_pack,          # (3, L, 128)
        "mod_w": params["mod_w"],        # (32, 96)
        "w1p": w1p,                      # (32, 256)
        "w2": params["w2"],              # (160, 32)
        "bias_pack": bias_pack,          # (3, 256)
    }
    return jax.tree_util.tree_map(jax.device_put, packed)


@jax.jit
def single_stream_forward(x, vec, packed):
    """x: (B, L, HID) f32, vec: (B, HID) f32, packed: output of pack_constants."""
    Bsz, Lq, HID = x.shape
    x2 = x.reshape(Bsz * Lq, HID)
    vmem = lambda: pl.BlockSpec(memory_space=pltpu.MemorySpace.VMEM)
    out2 = pl.pallas_call(
        single_stream_kernel,
        out_shape=jax.ShapeDtypeStruct((Bsz * Lq, HID), jnp.float32),
        in_specs=[vmem() for _ in range(7)],
        out_specs=vmem(),
    )(x2, vec, packed["rope_pack"], packed["mod_w"], packed["w1p"],
      packed["w2"], packed["bias_pack"])
    return out2.reshape(Bsz, Lq, HID)


# --------------------------------------------------------------------------
# Pure-JAX reference (mirrors the PyTorch forward exactly) for validation
# --------------------------------------------------------------------------
def reference_forward(x, vec, pe, params):
    H, D, HID = NUM_HEADS, HEAD_DIM, HIDDEN
    sv = jax.nn.silu(vec)
    mod = sv @ params["mod_w"] + params["mod_b"][0]
    shift, scale, gate = jnp.split(mod[:, None, :], 3, axis=-1)

    mean = x.mean(-1, keepdims=True)
    var = ((x - mean) ** 2).mean(-1, keepdims=True)
    ln = (x - mean) / jnp.sqrt(var + EPS_LN)
    x_mod = (1 + scale) * ln + shift

    h1 = x_mod @ params["w1"] + params["b1"][0]
    qkv, mlp = h1[..., : 3 * HID], h1[..., 3 * HID:]
    qkv = qkv.reshape(B, L, 3, H, D).transpose(2, 0, 3, 1, 4)     # K B H L D
    q, k, v = qkv[0], qkv[1], qkv[2]

    q = q * jax.lax.rsqrt(jnp.mean(q * q, -1, keepdims=True) + EPS_RMS) * params["q_scale"][0]
    k = k * jax.lax.rsqrt(jnp.mean(k * k, -1, keepdims=True) + EPS_RMS) * params["k_scale"][0]

    def rope(t):
        t_ = t.reshape(*t.shape[:-1], -1, 1, 2)
        out = pe[..., 0] * t_[..., 0] + pe[..., 1] * t_[..., 1]
        return out.reshape(t.shape)

    q, k = rope(q), rope(k)
    s = jnp.einsum("bhld,bhmd->bhlm", q, k) / math.sqrt(D)
    p = jax.nn.softmax(s, axis=-1)
    o = jnp.einsum("bhlm,bhmd->bhld", p, v)
    attn = o.transpose(0, 2, 1, 3).reshape(B, L, HID)

    mlp_act = jax.nn.gelu(mlp, approximate=True)
    out = jnp.concatenate([attn, mlp_act], -1) @ params["w2"] + params["b2"][0]
    return x + gate * out


# --------------------------------------------------------------------------
if __name__ == "__main__":
    key = jax.random.PRNGKey(0)
    ks = jax.random.split(key, 10)

    x = jax.random.normal(ks[0], (B, L, HIDDEN), jnp.float32)
    vec = jax.random.normal(ks[1], (B, HIDDEN), jnp.float32)

    # flux-style RoPE tensor: (1, 1, L, D//2, 2, 2) with [[cos,-sin],[sin,cos]]
    pos = jnp.arange(L, dtype=jnp.float32)[:, None]
    inv_freq = 1.0 / (10000.0 ** (jnp.arange(0, HEAD_DIM, 2, dtype=jnp.float32) / HEAD_DIM))
    theta = pos * inv_freq[None, :]                       # (L, D//2)
    cos, sin = jnp.cos(theta), jnp.sin(theta)
    pe = jnp.stack(
        [jnp.stack([cos, -sin], -1), jnp.stack([sin, cos], -1)], -2
    )[None, None]                                         # (1, 1, L, D//2, 2, 2)

    params = {
        "mod_w": 0.1 * jax.random.normal(ks[2], (HIDDEN, 3 * HIDDEN), jnp.float32),
        "mod_b": 0.05 * jax.random.normal(ks[3], (1, 3 * HIDDEN), jnp.float32),
        "w1": 0.1 * jax.random.normal(ks[4], (HIDDEN, 3 * HIDDEN + MLP_HIDDEN), jnp.float32),
        "b1": 0.05 * jax.random.normal(ks[5], (1, 3 * HIDDEN + MLP_HIDDEN), jnp.float32),
        "w2": 0.1 * jax.random.normal(ks[6], (HIDDEN + MLP_HIDDEN, HIDDEN), jnp.float32),
        "b2": 0.05 * jax.random.normal(ks[7], (1, HIDDEN), jnp.float32),
        "q_scale": jnp.ones((1, HEAD_DIM), jnp.float32),   # RMSNorm init = ones
        "k_scale": jnp.ones((1, HEAD_DIM), jnp.float32),
    }

    # One-time packing (module init), then the lean forward.
    packed = pack_constants(params, pe)
    out = single_stream_forward(x, vec, packed)
    out = jax.block_until_ready(out)

    ref = reference_forward(x, vec, pe, params)
    assert out.shape == (B, L, HIDDEN)
    assert jnp.allclose(out, ref, atol=2e-3, rtol=2e-3), (
        f"max abs err {float(jnp.max(jnp.abs(out - ref)))}"
    )

    print("KERNEL_OK")
</pallas_src>

<mosaic_0001>
module attributes {stable_mosaic.version = 11 : i64} {
  func.func @single_stream_kernel(%arg0: memref<16x32xf32, #tpu.memory_space<vmem>>, %arg1: memref<2x32xf32, #tpu.memory_space<vmem>>, %arg2: memref<3x8x128xf32, #tpu.memory_space<vmem>>, %arg3: memref<32x96xf32, #tpu.memory_space<vmem>>, %arg4: memref<32x256xf32, #tpu.memory_space<vmem>>, %arg5: memref<160x32xf32, #tpu.memory_space<vmem>>, %arg6: memref<3x256xf32, #tpu.memory_space<vmem>>, %arg7: memref<16x32xf32, #tpu.memory_space<vmem>>) attributes {dimension_semantics = [], scalar_prefetch = 0 : i64, scratch_operands = 0 : i64, tpu.core_type = #tpu.core_type<tc>} {
    %c0 = arith.constant 0 : index
    %c0_0 = arith.constant 0 : index
    %0 = vector.load %arg0[%c0, %c0_0] : memref<16x32xf32, #tpu.memory_space<vmem>>, vector<16x32xf32>
    %c0_1 = arith.constant 0 : index
    %c0_2 = arith.constant 0 : index
    %1 = vector.load %arg6[%c0_1, %c0_2] : memref<3x256xf32, #tpu.memory_space<vmem>>, vector<1x256xf32>
    %c1 = arith.constant 1 : index
    %c0_3 = arith.constant 0 : index
    %2 = vector.load %arg6[%c1, %c0_3] : memref<3x256xf32, #tpu.memory_space<vmem>>, vector<1x96xf32>
    %c2 = arith.constant 2 : index
    %c0_4 = arith.constant 0 : index
    %3 = vector.load %arg6[%c2, %c0_4] : memref<3x256xf32, #tpu.memory_space<vmem>>, vector<1x32xf32>
    %c0_5 = arith.constant 0 : index
    %c0_6 = arith.constant 0 : index
    %4 = vector.load %arg1[%c0_5, %c0_6] : memref<2x32xf32, #tpu.memory_space<vmem>>, vector<2x32xf32>
    %5 = arith.negf %4 : vector<2x32xf32>
    %6 = math.exp %5 : vector<2x32xf32>
    %cst = arith.constant 1.000000e+00 : f32
    %7 = vector.broadcast %cst : f32 to vector<2x32xf32>
    %8 = arith.addf %7, %6 : vector<2x32xf32>
    %9 = arith.divf %7, %8 : vector<2x32xf32>
    %10 = arith.mulf %4, %9 : vector<2x32xf32>
    %c0_7 = arith.constant 0 : index
    %c0_8 = arith.constant 0 : index
    %11 = vector.load %arg3[%c0_7, %c0_8] : memref<32x96xf32, #tpu.memory_space<vmem>>, vector<32x96xf32>
    %cst_9 = arith.constant dense<0.000000e+00> : vector<2x96xf32>
    %12 = tpu.matmul %10, %11, %cst_9 {dimension_numbers = #tpu.dot_dimension_numbers<[1], [0], [0], [1], [0, 0, 1, 1], [], []>} : vector<2x32xf32>, vector<32x96xf32>, vector<2x96xf32> -> vector<2x96xf32>
    %13 = vector.broadcast %2 : vector<1x96xf32> to vector<2x96xf32>
    %14 = arith.addf %12, %13 : vector<2x96xf32>
    %15 = vector.extract_strided_slice %14 {offsets = [0, 0], sizes = [1, 96], strides = [1, 1]} : vector<2x96xf32> to vector<1x96xf32>
    %16 = vector.shape_cast %15 : vector<1x96xf32> to vector<1x96xf32>
    %17 = vector.broadcast %16 : vector<1x96xf32> to vector<8x96xf32>
    %18 = vector.extract_strided_slice %14 {offsets = [1, 0], sizes = [1, 96], strides = [1, 1]} : vector<2x96xf32> to vector<1x96xf32>
    %19 = vector.shape_cast %18 : vector<1x96xf32> to vector<1x96xf32>
    %20 = vector.broadcast %19 : vector<1x96xf32> to vector<8x96xf32>
    %21 = tpu.concatenate %17, %20 in 0 : vector<8x96xf32>, vector<8x96xf32> -> vector<16x96xf32>
    %22 = vector.extract_strided_slice %21 {offsets = [0, 0], sizes = [16, 32], strides = [1, 1]} : vector<16x96xf32> to vector<16x32xf32>
    %23 = vector.extract_strided_slice %21 {offsets = [0, 32], sizes = [16, 32], strides = [1, 1]} : vector<16x96xf32> to vector<16x32xf32>
    %24 = vector.extract_strided_slice %21 {offsets = [0, 64], sizes = [16, 32], strides = [1, 1]} : vector<16x96xf32> to vector<16x32xf32>
    %cst_10 = arith.constant dense<0.000000e+00> : vector<16xf32>
    %25 = vector.multi_reduction <add>, %0, %cst_10 [1] : vector<16x32xf32> to vector<16xf32>
    %26 = vector.shape_cast %25 : vector<16xf32> to vector<16x1xf32>
    %cst_11 = arith.constant 3.200000e+01 : f32
    %27 = vector.broadcast %cst_11 : f32 to vector<16x1xf32>
    %28 = arith.divf %26, %27 : vector<16x1xf32>
    %29 = vector.broadcast %28 : vector<16x1xf32> to vector<16x32xf32>
    %30 = arith.subf %0, %29 : vector<16x32xf32>
    %31 = arith.mulf %30, %30 : vector<16x32xf32>
    %cst_12 = arith.constant dense<0.000000e+00> : vector<16xf32>
    %32 = vector.multi_reduction <add>, %31, %cst_12 [1] : vector<16x32xf32> to vector<16xf32>
    %33 = vector.shape_cast %32 : vector<16xf32> to vector<16x1xf32>
    %cst_13 = arith.constant 3.200000e+01 : f32
    %34 = vector.broadcast %cst_13 : f32 to vector<16x1xf32>
    %35 = arith.divf %33, %34 : vector<16x1xf32>
    %cst_14 = arith.constant 1.000000e+00 : f32
    %36 = vector.broadcast %cst_14 : f32 to vector<16x32xf32>
    %37 = arith.addf %36, %23 : vector<16x32xf32>
    %cst_15 = arith.constant 9.99999997E-7 : f32
    %38 = vector.broadcast %cst_15 : f32 to vector<16x1xf32>
    %39 = arith.addf %35, %38 : vector<16x1xf32>
    %40 = math.rsqrt %39 : vector<16x1xf32>
    %41 = vector.broadcast %40 : vector<16x1xf32> to vector<16x32xf32>
    %42 = arith.mulf %30, %41 : vector<16x32xf32>
    %43 = arith.mulf %37, %42 : vector<16x32xf32>
    %44 = arith.addf %43, %22 : vector<16x32xf32>
    %c0_16 = arith.constant 0 : index
    %c0_17 = arith.constant 0 : index
    %45 = vector.load %arg4[%c0_16, %c0_17] : memref<32x256xf32, #tpu.memory_space<vmem>>, vector<32x256xf32>
    %cst_18 = arith.constant dense<0.000000e+00> : vector<16x256xf32>
    %46 = tpu.matmul %44, %45, %cst_18 {dimension_numbers = #tpu.dot_dimension_numbers<[1], [0], [0], [1], [0, 0, 1, 1], [], []>} : vector<16x32xf32>, vector<32x256xf32>, vector<16x256xf32> -> vector<16x256xf32>
    %47 = vector.broadcast %1 : vector<1x256xf32> to vector<16x256xf32>
    %48 = arith.addf %46, %47 : vector<16x256xf32>
    %49 = vector.extract_strided_slice %48 {offsets = [0, 0], sizes = [16, 128], strides = [1, 1]} : vector<16x256xf32> to vector<16x128xf32>
    %50 = vector.extract_strided_slice %48 {offsets = [0, 128], sizes = [16, 128], strides = [1, 1]} : vector<16x256xf32> to vector<16x128xf32>
    %c0_19 = arith.constant 0 : index
    %c0_20 = arith.constant 0 : index
    %c0_21 = arith.constant 0 : index
    %51 = vector.load %arg2[%c0_19, %c0_20, %c0_21] : memref<3x8x128xf32, #tpu.memory_space<vmem>>, vector<1x8x128xf32>
    %52 = vector.shape_cast %51 : vector<1x8x128xf32> to vector<8x128xf32>
    %53 = tpu.concatenate %52, %52 in 0 : vector<8x128xf32>, vector<8x128xf32> -> vector<16x128xf32>
    %c1_22 = arith.constant 1 : index
    %c0_23 = arith.constant 0 : index
    %c0_24 = arith.constant 0 : index
    %54 = vector.load %arg2[%c1_22, %c0_23, %c0_24] : memref<3x8x128xf32, #tpu.memory_space<vmem>>, vector<1x8x128xf32>
    %55 = vector.shape_cast %54 : vector<1x8x128xf32> to vector<8x128xf32>
    %56 = tpu.concatenate %55, %55 in 0 : vector<8x128xf32>, vector<8x128xf32> -> vector<16x128xf32>
    %c2_25 = arith.constant 2 : index
    %c0_26 = arith.constant 0 : index
    %c0_27 = arith.constant 0 : index
    %57 = vector.load %arg2[%c2_25, %c0_26, %c0_27] : memref<3x8x128xf32, #tpu.memory_space<vmem>>, vector<1x8x128xf32>
    %58 = vector.shape_cast %57 : vector<1x8x128xf32> to vector<8x128xf32>
    %59 = tpu.concatenate %58, %58 in 0 : vector<8x128xf32>, vector<8x128xf32> -> vector<16x128xf32>
    %60 = arith.mulf %53, %49 : vector<16x128xf32>
    %61 = arith.mulf %49, %56 : vector<16x128xf32>
    %c1_i32 = arith.constant 1 : i32
    %62 = tpu.dynamic_rotate %61 by %c1_i32 dim 1 : vector<16x128xf32>, i32 -> vector<16x128xf32>
    %63 = arith.addf %60, %62 : vector<16x128xf32>
    %64 = arith.mulf %49, %59 : vector<16x128xf32>
    %c127_i32 = arith.constant 127 : i32
    %65 = tpu.dynamic_rotate %64 by %c127_i32 dim 1 : vector<16x128xf32>, i32 -> vector<16x128xf32>
    %66 = arith.addf %63, %65 : vector<16x128xf32>
    %67 = tpu.iota {dimensions = array<i32: 0>} : vector<128x128xi32>
    %68 = tpu.iota {dimensions = array<i32: 1>} : vector<128x128xi32>
    %c4_i32 = arith.constant 4 : i32
    %69 = vector.broadcast %c4_i32 : i32 to vector<128x128xi32>
    %70 = arith.shrsi %67, %69 : vector<128x128xi32>
    %c4_i32_28 = arith.constant 4 : i32
    %71 = vector.broadcast %c4_i32_28 : i32 to vector<128x128xi32>
    %72 = arith.shrsi %68, %71 : vector<128x128xi32>
    %73 = arith.cmpi eq, %70, %72 : vector<128x128xi32>
    %c64_i32 = arith.constant 64 : i32
    %74 = vector.broadcast %c64_i32 : i32 to vector<128x128xi32>
    %75 = arith.cmpi slt, %68, %74 : vector<128x128xi32>
    %76 = arith.andi %73, %75 : vector<128x128xi1>
    %cst_29 = arith.constant 6.250000e-02 : f32
    %cst_30 = arith.constant 0.000000e+00 : f32
    %77 = vector.broadcast %cst_29 : f32 to vector<128x128xf32>
    %78 = vector.broadcast %cst_30 : f32 to vector<128x128xf32>
    %79 = arith.select %76, %77, %78 : vector<128x128xi1>, vector<128x128xf32>
    %80 = arith.mulf %49, %49 : vector<16x128xf32>
    %cst_31 = arith.constant dense<0.000000e+00> : vector<16x128xf32>
    %81 = tpu.matmul %80, %79, %cst_31 {dimension_numbers = #tpu.dot_dimension_numbers<[1], [0], [0], [1], [0, 0, 1, 1], [], []>} : vector<16x128xf32>, vector<128x128xf32>, vector<16x128xf32> -> vector<16x128xf32>
    %cst_32 = arith.constant 9.99999997E-7 : f32
    %82 = vector.broadcast %cst_32 : f32 to vector<16x128xf32>
    %83 = arith.addf %81, %82 : vector<16x128xf32>
    %84 = math.rsqrt %83 : vector<16x128xf32>
    %85 = arith.mulf %66, %84 : vector<16x128xf32>
    %c0_33 = arith.constant 0 : index
    %c0_34 = arith.constant 0 : index
    %86 = vector.load %arg5[%c0_33, %c0_34] : memref<160x32xf32, #tpu.memory_space<vmem>>, vector<32x32xf32>
    %c32 = arith.constant 32 : index
    %c0_35 = arith.constant 0 : index
    %87 = vector.load %arg5[%c32, %c0_35] : memref<160x32xf32, #tpu.memory_space<vmem>>, vector<128x32xf32>
    %88 = arith.mulf %50, %50 : vector<16x128xf32>
    %89 = arith.mulf %50, %88 : vector<16x128xf32>
    %cst_36 = arith.constant 4.471500e-02 : f32
    %90 = vector.broadcast %cst_36 : f32 to vector<16x128xf32>
    %91 = arith.mulf %90, %89 : vector<16x128xf32>
    %92 = arith.addf %50, %91 : vector<16x128xf32>
    %cst_37 = arith.constant 0.797884583 : f32
    %93 = vector.broadcast %cst_37 : f32 to vector<16x128xf32>
    %94 = arith.mulf %93, %92 : vector<16x128xf32>
    %95 = math.tanh %94 : vector<16x128xf32>
    %cst_38 = arith.constant 1.000000e+00 : f32
    %96 = vector.broadcast %cst_38 : f32 to vector<16x128xf32>
    %97 = arith.addf %96, %95 : vector<16x128xf32>
    %cst_39 = arith.constant 5.000000e-01 : f32
    %98 = vector.broadcast %cst_39 : f32 to vector<16x128xf32>
    %99 = arith.mulf %98, %97 : vector<16x128xf32>
    %100 = arith.mulf %50, %99 : vector<16x128xf32>
    %cst_40 = arith.constant dense<0.000000e+00> : vector<16x32xf32>
    %101 = tpu.matmul %100, %87, %cst_40 {dimension_numbers = #tpu.dot_dimension_numbers<[1], [0], [0], [1], [0, 0, 1, 1], [], []>} : vector<16x128xf32>, vector<128x32xf32>, vector<16x32xf32> -> vector<16x32xf32>
    %102 = vector.broadcast %3 : vector<1x32xf32> to vector<16x32xf32>
    %103 = arith.addf %101, %102 : vector<16x32xf32>
    %104 = tpu.iota {dimensions = array<i32: 0>} : vector<16x16xi32>
    %105 = tpu.iota {dimensions = array<i32: 1>} : vector<16x16xi32>
    %c3_i32 = arith.constant 3 : i32
    %106 = vector.broadcast %c3_i32 : i32 to vector<16x16xi32>
    %107 = arith.shrsi %104, %106 : vector<16x16xi32>
    %c3_i32_41 = arith.constant 3 : i32
    %108 = vector.broadcast %c3_i32_41 : i32 to vector<16x16xi32>
    %109 = arith.shrsi %105, %108 : vector<16x16xi32>
    %110 = arith.cmpi eq, %107, %109 : vector<16x16xi32>
    %cst_42 = arith.constant 0.000000e+00 : f32
    %cst_43 = arith.constant -1.000000e+30 : f32
    %111 = vector.broadcast %cst_42 : f32 to vector<16x16xf32>
    %112 = vector.broadcast %cst_43 : f32 to vector<16x16xf32>
    %113 = arith.select %110, %111, %112 : vector<16x16xi1>, vector<16x16xf32>
    %114 = vector.extract_strided_slice %85 {offsets = [0, 0], sizes = [16, 16], strides = [1, 1]} : vector<16x128xf32> to vector<16x16xf32>
    %115 = vector.extract_strided_slice %85 {offsets = [0, 32], sizes = [16, 16], strides = [1, 1]} : vector<16x128xf32> to vector<16x16xf32>
    %116 = vector.extract_strided_slice %49 {offsets = [0, 64], sizes = [16, 16], strides = [1, 1]} : vector<16x128xf32> to vector<16x16xf32>
    %cst_44 = arith.constant dense<0.000000e+00> : vector<16x16xf32>
    %117 = tpu.matmul %114, %115, %cst_44 {dimension_numbers = #tpu.dot_dimension_numbers<[1], [1], [0], [0], [0, 0, 1, 0], [], []>} : vector<16x16xf32>, vector<16x16xf32>, vector<16x16xf32> -> vector<16x16xf32>
    %118 = arith.addf %117, %113 : vector<16x16xf32>
    %cst_45 = arith.constant dense<0xFF800000> : vector<16xf32>
    %119 = vector.multi_reduction <maximumf>, %118, %cst_45 [1] : vector<16x16xf32> to vector<16xf32>
    %120 = vector.shape_cast %119 : vector<16xf32> to vector<16x1xf32>
    %121 = vector.broadcast %120 : vector<16x1xf32> to vector<16x16xf32>
    %122 = arith.subf %118, %121 : vector<16x16xf32>
    %123 = math.exp %122 : vector<16x16xf32>
    %cst_46 = arith.constant dense<0.000000e+00> : vector<16xf32>
    %124 = vector.multi_reduction <add>, %123, %cst_46 [1] : vector<16x16xf32> to vector<16xf32>
    %125 = vector.shape_cast %124 : vector<16xf32> to vector<16x1xf32>
    %126 = vector.broadcast %125 : vector<16x1xf32> to vector<16x16xf32>
    %127 = arith.divf %123, %126 : vector<16x16xf32>
    %cst_47 = arith.constant dense<0.000000e+00> : vector<16x16xf32>
    %128 = tpu.matmul %127, %116, %cst_47 {dimension_numbers = #tpu.dot_dimension_numbers<[1], [0], [0], [1], [0, 0, 1, 1], [], []>} : vector<16x16xf32>, vector<16x16xf32>, vector<16x16xf32> -> vector<16x16xf32>
    %129 = vector.extract_strided_slice %86 {offsets = [0, 0], sizes = [16, 32], strides = [1, 1]} : vector<32x32xf32> to vector<16x32xf32>
    %cst_48 = arith.constant dense<0.000000e+00> : vector<16x32xf32>
    %130 = tpu.matmul %128, %129, %cst_48 {dimension_numbers = #tpu.dot_dimension_numbers<[1], [0], [0], [1], [0, 0, 1, 1], [], []>} : vector<16x16xf32>, vector<16x32xf32>, vector<16x32xf32> -> vector<16x32xf32>
    %131 = arith.addf %103, %130 : vector<16x32xf32>
    %132 = vector.extract_strided_slice %85 {offsets = [0, 16], sizes = [16, 16], strides = [1, 1]} : vector<16x128xf32> to vector<16x16xf32>
    %133 = vector.extract_strided_slice %85 {offsets = [0, 48], sizes = [16, 16], strides = [1, 1]} : vector<16x128xf32> to vector<16x16xf32>
    %134 = vector.extract_strided_slice %49 {offsets = [0, 80], sizes = [16, 16], strides = [1, 1]} : vector<16x128xf32> to vector<16x16xf32>
    %cst_49 = arith.constant dense<0.000000e+00> : vector<16x16xf32>
    %135 = tpu.matmul %132, %133, %cst_49 {dimension_numbers = #tpu.dot_dimension_numbers<[1], [1], [0], [0], [0, 0, 1, 0], [], []>} : vector<16x16xf32>, vector<16x16xf32>, vector<16x16xf32> -> vector<16x16xf32>
    %136 = arith.addf %135, %113 : vector<16x16xf32>
    %cst_50 = arith.constant dense<0xFF800000> : vector<16xf32>
    %137 = vector.multi_reduction <maximumf>, %136, %cst_50 [1] : vector<16x16xf32> to vector<16xf32>
    %138 = vector.shape_cast %137 : vector<16xf32> to vector<16x1xf32>
    %139 = vector.broadcast %138 : vector<16x1xf32> to vector<16x16xf32>
    %140 = arith.subf %136, %139 : vector<16x16xf32>
    %141 = math.exp %140 : vector<16x16xf32>
    %cst_51 = arith.constant dense<0.000000e+00> : vector<16xf32>
    %142 = vector.multi_reduction <add>, %141, %cst_51 [1] : vector<16x16xf32> to vector<16xf32>
    %143 = vector.shape_cast %142 : vector<16xf32> to vector<16x1xf32>
    %144 = vector.broadcast %143 : vector<16x1xf32> to vector<16x16xf32>
    %145 = arith.divf %141, %144 : vector<16x16xf32>
    %cst_52 = arith.constant dense<0.000000e+00> : vector<16x16xf32>
    %146 = tpu.matmul %145, %134, %cst_52 {dimension_numbers = #tpu.dot_dimension_numbers<[1], [0], [0], [1], [0, 0, 1, 1], [], []>} : vector<16x16xf32>, vector<16x16xf32>, vector<16x16xf32> -> vector<16x16xf32>
    %147 = vector.extract_strided_slice %86 {offsets = [16, 0], sizes = [16, 32], strides = [1, 1]} : vector<32x32xf32> to vector<16x32xf32>
    %cst_53 = arith.constant dense<0.000000e+00> : vector<16x32xf32>
    %148 = tpu.matmul %146, %147, %cst_53 {dimension_numbers = #tpu.dot_dimension_numbers<[1], [0], [0], [1], [0, 0, 1, 1], [], []>} : vector<16x16xf32>, vector<16x32xf32>, vector<16x32xf32> -> vector<16x32xf32>
    %149 = arith.addf %131, %148 : vector<16x32xf32>
    %150 = arith.mulf %24, %149 : vector<16x32xf32>
    %151 = arith.addf %0, %150 : vector<16x32xf32>
    %c0_54 = arith.constant 0 : index
    %c0_55 = arith.constant 0 : index
    %152 = vector.load %arg7[%c0_54, %c0_55] : memref<16x32xf32, #tpu.memory_space<vmem>>, vector<16x32xf32>
    tpu.vector_store %arg7[%c0_54, %c0_55], %151 {strides = array<i32>} : memref<16x32xf32, #tpu.memory_space<vmem>>, vector<16x32xf32>,
    return
  }
}

</mosaic_0001>

<llo_original>
// kernel: single_stream_forward.1
$region0: #{single_stream_forward.1}
  #allocation0 [shape = 'u32[]', space=smem, size = 0x4, offset = 0x4, fixed_abs, tag = 'smem constant byte address 0x4 - core index']
  #allocation1 [shape = 'u32[144,128]{1,0:T(1,128)}', space=vmem, size = 0x12000, scoped, tag = 'internal scratch']
  %s0 = inlined_call_operand.vmem [shape: f32[16,32], index: 0, kind: input, shape index: {}]
  %s1 = inlined_call_operand.vmem [shape: f32[2,32], index: 1, kind: input, shape index: {}]
  %s2 = inlined_call_operand.vmem [shape: f32[3,8,128], index: 2, kind: input, shape index: {}]
  %s3 = inlined_call_operand.vmem [shape: f32[32,96], index: 3, kind: input, shape index: {}]
  %s4 = inlined_call_operand.vmem [shape: f32[32,256], index: 4, kind: input, shape index: {}]
  %s5 = inlined_call_operand.vmem [shape: f32[160,32], index: 5, kind: input, shape index: {}]
  %s6 = inlined_call_operand.vmem [shape: f32[3,256], index: 6, kind: input, shape index: {}]
  %s7 = inlined_call_operand.hbm [shape: f32[16,32], index: 7, kind: output, shape index: {}]
  %s8 = sld [smem:[#allocation0]]
  $region38: #{single_stream_forward.1} parent=0
    _
  %s10 = ssub.s32 1, %s8
  %s11 = scalar_select 0, %s10, %s8
  $region1: #{single_stream_forward.1} parent=0
    #allocation2 [shape = 'u8[8192]{0}', space=vmem, size = 0x2000, scoped, tag = 'output window, operand 0, single buffered']
    #allocation3 [shape = 's32[1]{0}', space=sflag, size = 0x4, scoped, tag = 'scoped memory for single_stream_forward.1']
    %12 = vsyncpa [#allocation3], 0
    // Predicated region
    $region2: #{single_stream_forward.1} parent=1 // pred_check
      _
    $region3: #{single_stream_forward.1} parent=1 // pred_check_branch
      %14 = sbr.rel (0) target = $region5
    $region4: #{single_stream_forward.1} parent=1 // pred_region
      _
    $region5: #{single_stream_forward.1} parent=1 // pred_fallthru
      _
    // Predicated region
    $region6: #{single_stream_forward.1} parent=1 // pred_check
      _
    $region7: #{single_stream_forward.1} parent=1 // pred_check_branch
      %16 = sbr.rel (0) target = $region9
    $region8: #{single_stream_forward.1} parent=1 // pred_region
      _
    $region9: #{single_stream_forward.1} parent=1 // pred_fallthru
      _
    // Predicated region
    $region10: #{single_stream_forward.1} parent=1 // pred_check
      _
    $region11: #{single_stream_forward.1} parent=1 // pred_check_branch
      %18 = sbr.rel (0) target = $region13
    $region12: #{single_stream_forward.1} parent=1 // pred_region
      _
    $region13: #{single_stream_forward.1} parent=1 // pred_fallthru
      _
    // Predicated region
    $region14: #{single_stream_forward.1} parent=1 // pred_check
      _
    $region15: #{single_stream_forward.1} parent=1 // pred_check_branch
      %20 = sbr.rel (0) target = $region17
    $region16: #{single_stream_forward.1} parent=1 // pred_region
      _
    $region17: #{single_stream_forward.1} parent=1 // pred_fallthru
      _
    // Predicated region
    $region18: #{single_stream_forward.1} parent=1 // pred_check
      _
    $region19: #{single_stream_forward.1} parent=1 // pred_check_branch
      %22 = sbr.rel (0) target = $region21
    $region20: #{single_stream_forward.1} parent=1 // pred_region
      _
    $region21: #{single_stream_forward.1} parent=1 // pred_fallthru
      _
    // Predicated region
    $region22: #{single_stream_forward.1} parent=1 // pred_check
      _
    $region23: #{single_stream_forward.1} parent=1 // pred_check_branch
      %24 = sbr.rel (0) target = $region25
    $region24: #{single_stream_forward.1} parent=1 // pred_region
      _
    $region25: #{single_stream_forward.1} parent=1 // pred_fallthru
      _
    // Predicated region
    $region26: #{single_stream_forward.1} parent=1 // pred_check
      _
    $region27: #{single_stream_forward.1} parent=1 // pred_check_branch
      %26 = sbr.rel (0) target = $region29
    $region28: #{single_stream_forward.1} parent=1 // pred_region
      _
    $region29: #{single_stream_forward.1} parent=1 // pred_fallthru
      _
    %v27 = vld [vmem:[%s0] sm:$0xff]
    %v28 = vld [vmem:[%s0 + $0x8] sm:$0xff]
    %v29 = vld [vmem:[%s6] ss:$4 sm:$0x3]
    %v30 = vld [vmem:[%s6 + $0x1] sm:$0x1]
    %v31 = vld [vmem:[%s6 + $0x2] sm:$0x1]
    %v32 = vld [vmem:[%s1] sm:$0x3]
    %v33 = vxor.u32 %v32, 2147483648
    %v34 = vmul.f32 %v33, 1.442695
    %v35 = vpow.pop %v34
    %v36 = vadd.f32 %v35, 1.0
    %v37 = vrcp.pop %v36
    %v38 = vmul.f32 1.0, %v37
    %v39 = vmul.f32 %v32, %v38
    %v40 = vld [vmem:[%s3] sm:$0xff]
    %v41 = vld [vmem:[%s3 + $0x8] sm:$0xff]
    %v42 = vld [vmem:[%s3 + $0x10] sm:$0xff]
    %v43 = vld [vmem:[%s3 + $0x18] sm:$0xff]
    %v44 = vlaneseq
    %v45 = vshrl.u32 %v44, 7
    %v46 = vsub.s32 0, %v45
    %v47 = vrot.slane %v30, %v46
    %vm48 = vcmask 261120
    %v50 = vsel %vm48, %v39, 0
    %52 = vmatprep.subr.mxu0 0.0
    %53 = vmatpush1.msra.mxu0 %v40
    %54 = vmatprep.subr.mxu0 0.0
    %55 = vmatpush1.msra.mxu0 %v41
    %56 = vmatprep.subr.mxu0 0.0
    %57 = vmatpush1.msra.mxu0 %v42
    %58 = vmatprep.subr.mxu0 0.0
    %59 = vmatpush1.msra.mxu0 %v43
    %60 = vmatprep.subr.mxu0 0.0
    %61 = vmatpush1.msra.mxu0 0.0
    %62 = vmatprep.subr.mxu0 0.0
    %63 = vmatpush1.msra.mxu0 0.0
    %64 = vmatprep.subr.mxu0 0.0
    %65 = vmatpush1.msra.mxu0 0.0
    %66 = vmatprep.subr.mxu0 0.0
    %67 = vmatpush1.msra.mxu0 0.0
    %68 = vmatprep.subr.mxu0 0.0
    %69 = vmatpush1.msra.mxu0 0.0
    %70 = vmatprep.subr.mxu0 0.0
    %71 = vmatpush1.msra.mxu0 0.0
    %72 = vmatprep.subr.mxu0 0.0
    %73 = vmatpush1.msra.mxu0 0.0
    %74 = vmatprep.subr.mxu0 0.0
    %75 = vmatpush1.msra.mxu0 0.0
    %76 = vmatprep.subr.mxu0 0.0
    %77 = vmatpush1.msra.mxu0 0.0
    %78 = vmatprep.subr.mxu0 0.0
    %79 = vmatpush1.msra.mxu0 0.0
    %80 = vmatprep.subr.mxu0 0.0
    %81 = vmatpush1.msra.mxu0 0.0
    %82 = vmatprep.subr.mxu0 0.0
    %83 = vmatpush1.msra.mxu0 0.0
    %84 = vmatprep.subr.mxu0 0.0
    %85 = vmatpush1.msra.mxu0 0.0
    %86 = vmatprep.subr.mxu0 0.0
    %87 = vmatpush1.msra.mxu0 0.0
    %88 = vmatprep.subr.mxu0 0.0
    %89 = vmatpush1.msra.mxu0 0.0
    %90 = vmatprep.subr.mxu0 0.0
    %91 = vmatpush1.msra.mxu0 0.0
    %92 = vmatprep.subr.mxu0 0.0
    %93 = vmatpush1.msra.mxu0 0.0
    %94 = vmatprep.subr.mxu0 0.0
    %95 = vmatpush1.msra.mxu0 0.0
    %96 = vmatprep.subr.mxu0 0.0
    %97 = vmatpush1.msra.mxu0 0.0
    %98 = vmatprep.subr.mxu0 0.0
    %99 = vmatpush1.msra.mxu0 0.0
    %100 = vmatprep.subr.mxu0 0.0
    %101 = vmatpush1.msra.mxu0 0.0
    %102 = vmatprep.subr.mxu0 0.0
    %103 = vmatpush1.msra.mxu0 0.0
    %104 = vmatprep.subr.mxu0 0.0
    %105 = vmatpush1.msra.mxu0 0.0
    %106 = vmatprep.subr.mxu0 0.0
    %107 = vmatpush1.msra.mxu0 0.0
    %108 = vmatprep.subr.mxu0 0.0
    %109 = vmatpush1.msra.mxu0 0.0
    %110 = vmatprep.subr.mxu0 0.0
    %111 = vmatpush1.msra.mxu0 0.0
    %112 = vmatprep.subr.mxu0 0.0
    %113 = vmatpush1.msra.mxu0 0.0
    %114 = vmatprep.subr.mxu0 0.0
    %115 = vmatpush1.msra.mxu0 0.0
    %116 = vmatprep.mubr.f32.mxu0 0.0
    %117 = vmatmul.mubr.f32.gmra.mrb[0].mxu0 %v50
    %v118 = vpop.f32.mrb[0].mxu0
    %v119 = vadd.f32 %v47, %v118
    %v120 = vpop.f32.mrb[0].mxu0
    %121 = vdwg.mxu0
    %v122 = vlaneseq
    %v123 = vshrl.u32 %v122, 7
    %v124 = vsub.s32 0, %v123
    %v125 = vrot.slane %v119, %v124
    %v126 = vlaneseq
    %v127 = vshrl.u32 %v126, 7
    %v128 = vsub.s32 1, %v127
    %v129 = vrot.slane %v119, %v128
    %v130 = vsel %vm48, %v27, 0.0
    %131 = vadd.xlane.f32.xlu0 %v130
    %v132 = vpop.xlane.xlu0 %131
    %v133 = vsel %vm48, %v28, 0.0
    %134 = vadd.xlane.f32.xlu0 %v133
    %v135 = vpop.xlane.xlu0 %134
    %v136 = vrcp.pop 32.0
    %v137 = vmul.f32 %v132, %v136
    %v138 = vmul.f32 %v135, %v136
    %v139 = vsub.f32 %v27, %v137
    %v140 = vsub.f32 %v28, %v138
    %v141 = vmul.f32 %v139, %v139
    %v142 = vmul.f32 %v140, %v140
    %v143 = vsel %vm48, %v141, 0.0
    %144 = vadd.xlane.f32.xlu0 %v143
    %v145 = vpop.xlane.xlu0 %144
    %v146 = vsel %vm48, %v142, 0.0
    %147 = vadd.xlane.f32.xlu0 %v146
    %v148 = vpop.xlane.xlu0 %147
    %v149 = vmul.f32 %v145, %v136
    %v150 = vmul.f32 %v148, %v136
    %v151 = vadd.f32 %v125, 1.0
    %v152 = vadd.f32 %v129, 1.0
    %v153 = vadd.f32 %v149, 1e-06
    %v154 = vadd.f32 %v150, 1e-06
    %v155 = vrsqrt.pop %v153
    %v156 = vrsqrt.pop %v154
    %v157 = vmul.f32 %v139, %v155
    %v158 = vmul.f32 %v140, %v156
    %161 = vrot.lane.b32.xlu0 %v157, 32
    %v162 = vpop.permute.xlu0 %161
    %163 = vrot.lane.b32.xlu0 %v158, 32
    %v164 = vpop.permute.xlu0 %163
    %v167 = vmul.f32 %v151, %v162
    %v168 = vmul.f32 %v152, %v164
    %171 = vrot.lane.b32.xlu0 %v125, 32
    %v172 = vpop.permute.xlu0 %171
    %173 = vrot.lane.b32.xlu0 %v129, 32
    %v174 = vpop.permute.xlu0 %173
    %v177 = vadd.f32 %v167, %v172
    %v178 = vadd.f32 %v168, %v174
    %v179 = vld [vmem:[%s4] sm:$0xff]
    %v180 = vld [vmem:[%s4 + $0x8] sm:$0xff]
    %v181 = vld [vmem:[%s4 + $0x10] sm:$0xff]
    %v182 = vld [vmem:[%s4 + $0x18] sm:$0xff]
    %v183 = vld [vmem:[%s4 + $0x20] sm:$0xff]
    %v184 = vld [vmem:[%s4 + $0x28] sm:$0xff]
    %v185 = vld [vmem:[%s4 + $0x30] sm:$0xff]
    %v186 = vld [vmem:[%s4 + $0x38] sm:$0xff]
    %v188 = vlaneseq
    %v189 = vshrl.u32 %v188, 7
    %v190 = vsub.s32 0, %v189
    %v191 = vrot.slane %v29, %v190
    %v192 = vlaneseq
    %v193 = vshrl.u32 %v192, 7
    %v194 = vsub.s32 1, %v193
    %v195 = vrot.slane %v29, %v194
    %200 = vrot.lane.b32.xlu0 %v177, 96
    %v201 = vpop.permute.xlu0 %200
    %202 = vrot.lane.b32.xlu0 %v178, 96
    %v203 = vpop.permute.xlu0 %202
    %v204 = vsel %vm48, %v201, 0
    %v206 = vsel %vm48, %v203, 0
    %208 = vmatprep.subr.mxu0 %v180
    %209 = vmatpush1.msra.mxu0 %v179
    %210 = vmatprep.subr.mxu0 %v182
    %211 = vmatpush1.msra.mxu0 %v181
    %212 = vmatprep.subr.mxu0 %v184
    %213 = vmatpush1.msra.mxu0 %v183
    %214 = vmatprep.subr.mxu0 %v186
    %215 = vmatpush1.msra.mxu0 %v185
    %216 = vmatprep.subr.mxu0 0.0
    %217 = vmatpush1.msra.mxu0 0.0
    %218 = vmatprep.subr.mxu0 0.0
    %219 = vmatpush1.msra.mxu0 0.0
    %220 = vmatprep.subr.mxu0 0.0
    %221 = vmatpush1.msra.mxu0 0.0
    %222 = vmatprep.subr.mxu0 0.0
    %223 = vmatpush1.msra.mxu0 0.0
    %224 = vmatprep.subr.mxu0 0.0
    %225 = vmatpush1.msra.mxu0 0.0
    %226 = vmatprep.subr.mxu0 0.0
    %227 = vmatpush1.msra.mxu0 0.0
    %228 = vmatprep.subr.mxu0 0.0
    %229 = vmatpush1.msra.mxu0 0.0
    %230 = vmatprep.subr.mxu0 0.0
    %231 = vmatpush1.msra.mxu0 0.0
    %232 = vmatprep.subr.mxu0 0.0
    %233 = vmatpush1.msra.mxu0 0.0
    %234 = vmatprep.subr.mxu0 0.0
    %235 = vmatpush1.msra.mxu0 0.0
    %236 = vmatprep.subr.mxu0 0.0
    %237 = vmatpush1.msra.mxu0 0.0
    %238 = vmatprep.subr.mxu0 0.0
    %239 = vmatpush1.msra.mxu0 0.0
    %240 = vmatprep.subr.mxu0 0.0
    %241 = vmatpush1.msra.mxu0 0.0
    %242 = vmatprep.subr.mxu0 0.0
    %243 = vmatpush1.msra.mxu0 0.0
    %244 = vmatprep.subr.mxu0 0.0
    %245 = vmatpush1.msra.mxu0 0.0
    %246 = vmatprep.subr.mxu0 0.0
    %247 = vmatpush1.msra.mxu0 0.0
    %248 = vmatprep.subr.mxu0 0.0
    %249 = vmatpush1.msra.mxu0 0.0
    %250 = vmatprep.subr.mxu0 0.0
    %251 = vmatpush1.msra.mxu0 0.0
    %252 = vmatprep.subr.mxu0 0.0
    %253 = vmatpush1.msra.mxu0 0.0
    %254 = vmatprep.subr.mxu0 0.0
    %255 = vmatpush1.msra.mxu0 0.0
    %256 = vmatprep.subr.mxu0 0.0
    %257 = vmatpush1.msra.mxu0 0.0
    %258 = vmatprep.subr.mxu0 0.0
    %259 = vmatpush1.msra.mxu0 0.0
    %260 = vmatprep.subr.mxu0 0.0
    %261 = vmatpush1.msra.mxu0 0.0
    %262 = vmatprep.subr.mxu0 0.0
    %263 = vmatpush1.msra.mxu0 0.0
    %264 = vmatprep.subr.mxu0 0.0
    %265 = vmatpush1.msra.mxu0 0.0
    %266 = vmatprep.subr.mxu0 0.0
    %267 = vmatpush1.msra.mxu0 0.0
    %268 = vmatprep.subr.mxu0 0.0
    %269 = vmatpush1.msra.mxu0 0.0
    %270 = vmatprep.subr.mxu0 0.0
    %271 = vmatpush1.msra.mxu0 0.0
    %272 = vmatprep.mubr.f32.mxu0 0.0
    %273 = vmatmul.mubr.f32.gmra.mrb[0].mxu0 %v204
    %v274 = vpop.f32.mrb[0].mxu0
    %v275 = vadd.f32 %v191, %v274
    %v276 = vpop.f32.mrb[0].mxu0
    %v277 = vadd.f32 %v195, %v276
    %278 = vmatprep.mubr.f32.mxu0 0.0
    %279 = vmatmul.mubr.f32.gmra.mrb[0].mxu0 %v206
    %v280 = vpop.f32.mrb[0].mxu0
    %v281 = vadd.f32 %v191, %v280
    %v282 = vpop.f32.mrb[0].mxu0
    %v283 = vadd.f32 %v195, %v282
    %284 = vdwg.mxu0
    %v285 = vld [vmem:[%s2] sm:$0xff]
    %s286 = scalar_lea.vmem %s2, 8
    %v287 = vld [vmem:[%s286] sm:$0xff]
    %s288 = scalar_lea.vmem %s2, 16
    %v289 = vld [vmem:[%s288] sm:$0xff]
    %v290 = vmul.f32 %v285, %v275
    %v291 = vmul.f32 %v285, %v281
    %v292 = vmul.f32 %v275, %v287
    %v293 = vmul.f32 %v281, %v287
    %294 = vrot.lane.b32.xlu0 %v292, 1
    %v295 = vpop.permute.xlu0 %294
    %296 = vrot.lane.b32.xlu0 %v293, 1
    %v297 = vpop.permute.xlu0 %296
    %v298 = vadd.f32 %v290, %v295
    %v299 = vadd.f32 %v291, %v297
    %v300 = vmul.f32 %v275, %v289
    %v301 = vmul.f32 %v281, %v289
    %302 = vrot.lane.b32.xlu0 %v300, 127
    %v303 = vpop.permute.xlu0 %302
    %304 = vrot.lane.b32.xlu0 %v301, 127
    %v305 = vpop.permute.xlu0 %304
    %v306 = vadd.f32 %v298, %v303
    %v307 = vadd.f32 %v299, %v305
    %v308 = vlaneseq
    %v309 = vshrl.u32 %v308, 7
    %v310 = vadd.s32 %v309, 8
    %v311 = vadd.s32 %v309, 16
    %v312 = vadd.s32 %v309, 24
    %v313 = vadd.s32 %v309, 32
    %v314 = vadd.s32 %v309, 40
    %v315 = vadd.s32 %v309, 48
    %v316 = vadd.s32 %v309, 56
    %v317 = vadd.s32 %v309, 64
    %v318 = vadd.s32 %v309, 72
    %v319 = vadd.s32 %v309, 80
    %v320 = vadd.s32 %v309, 88
    %v321 = vadd.s32 %v309, 96
    %v322 = vadd.s32 %v309, 104
    %v323 = vadd.s32 %v309, 112
    %v324 = vadd.s32 %v309, 120
    %v325 = vlaneseq
    %v326 = vand.u32 %v325, 127
    %v327 = vshra.s32 %v309, 4
    %v328 = vshra.s32 %v310, 4
    %v329 = vshra.s32 %v311, 4
    %v330 = vshra.s32 %v312, 4
    %v331 = vshra.s32 %v313, 4
    %v332 = vshra.s32 %v314, 4
    %v333 = vshra.s32 %v315, 4
    %v334 = vshra.s32 %v316, 4
    %v335 = vshra.s32 %v317, 4
    %v336 = vshra.s32 %v318, 4
    %v337 = vshra.s32 %v319, 4
    %v338 = vshra.s32 %v320, 4
    %v339 = vshra.s32 %v321, 4
    %v340 = vshra.s32 %v322, 4
    %v341 = vshra.s32 %v323, 4
    %v342 = vshra.s32 %v324, 4
    %v343 = vshra.s32 %v326, 4
    %vm344 = vcmp.eq.s32.totalorder %v327, %v343
    %vm345 = vcmp.eq.s32.totalorder %v328, %v343
    %vm346 = vcmp.eq.s32.totalorder %v329, %v343
    %vm347 = vcmp.eq.s32.totalorder %v330, %v343
    %vm348 = vcmp.eq.s32.totalorder %v331, %v343
    %vm349 = vcmp.eq.s32.totalorder %v332, %v343
    %vm350 = vcmp.eq.s32.totalorder %v333, %v343
    %vm351 = vcmp.eq.s32.totalorder %v334, %v343
    %vm352 = vcmp.eq.s32.totalorder %v335, %v343
    %vm353 = vcmp.eq.s32.totalorder %v336, %v343
    %vm354 = vcmp.eq.s32.totalorder %v337, %v343
    %vm355 = vcmp.eq.s32.totalorder %v338, %v343
    %vm356 = vcmp.eq.s32.totalorder %v339, %v343
    %vm357 = vcmp.eq.s32.totalorder %v340, %v343
    %vm358 = vcmp.eq.s32.totalorder %v341, %v343
    %vm359 = vcmp.eq.s32.totalorder %v342, %v343
    %vm360 = vcmp.lt.s32.totalorder %v326, 64
    %vm361 = vmand %vm344, %vm360
    %vm362 = vmand %vm345, %vm360
    %vm363 = vmand %vm346, %vm360
    %vm364 = vmand %vm347, %vm360
    %vm365 = vmand %vm348, %vm360
    %vm366 = vmand %vm349, %vm360
    %vm367 = vmand %vm350, %vm360
    %vm368 = vmand %vm351, %vm360
    %vm369 = vmand %vm352, %vm360
    %vm370 = vmand %vm353, %vm360
    %vm371 = vmand %vm354, %vm360
    %vm372 = vmand %vm355, %vm360
    %vm373 = vmand %vm356, %vm360
    %vm374 = vmand %vm357, %vm360
    %vm375 = vmand %vm358, %vm360
    %vm376 = vmand %vm359, %vm360
    %v377 = vsel %vm361, 0.0625, 0.0
    %v378 = vsel %vm362, 0.0625, 0.0
    %v379 = vsel %vm363, 0.0625, 0.0
    %v380 = vsel %vm364, 0.0625, 0.0
    %v381 = vsel %vm365, 0.0625, 0.0
    %v382 = vsel %vm366, 0.0625, 0.0
    %v383 = vsel %vm367, 0.0625, 0.0
    %v384 = vsel %vm368, 0.0625, 0.0
    %v385 = vsel %vm369, 0.0625, 0.0
    %v386 = vsel %vm370, 0.0625, 0.0
    %v387 = vsel %vm371, 0.0625, 0.0
    %v388 = vsel %vm372, 0.0625, 0.0
    %v389 = vsel %vm373, 0.0625, 0.0
    %v390 = vsel %vm374, 0.0625, 0.0
    %v391 = vsel %vm375, 0.0625, 0.0
    %v392 = vsel %vm376, 0.0625, 0.0
    %v393 = vmul.f32 %v275, %v275
    %v394 = vmul.f32 %v281, %v281
    %395 = vmatprep.subr.mxu0 0.0
    %396 = vmatpush1.msra.mxu0 %v377
    %397 = vmatprep.subr.mxu0 0.0
    %398 = vmatpush1.msra.mxu0 %v378
    %399 = vmatprep.subr.mxu0 0.0
    %400 = vmatpush1.msra.mxu0 %v379
    %401 = vmatprep.subr.mxu0 0.0
    %402 = vmatpush1.msra.mxu0 %v380
    %403 = vmatprep.subr.mxu0 0.0
    %404 = vmatpush1.msra.mxu0 %v381
    %405 = vmatprep.subr.mxu0 0.0
    %406 = vmatpush1.msra.mxu0 %v382
    %407 = vmatprep.subr.mxu0 0.0
    %408 = vmatpush1.msra.mxu0 %v383
    %409 = vmatprep.subr.mxu0 0.0
    %410 = vmatpush1.msra.mxu0 %v384
    %411 = vmatprep.subr.mxu0 0.0
    %412 = vmatpush1.msra.mxu0 %v385
    %413 = vmatprep.subr.mxu0 0.0
    %414 = vmatpush1.msra.mxu0 %v386
    %415 = vmatprep.subr.mxu0 0.0
    %416 = vmatpush1.msra.mxu0 %v387
    %417 = vmatprep.subr.mxu0 0.0
    %418 = vmatpush1.msra.mxu0 %v388
    %419 = vmatprep.subr.mxu0 0.0
    %420 = vmatpush1.msra.mxu0 %v389
    %421 = vmatprep.subr.mxu0 0.0
    %422 = vmatpush1.msra.mxu0 %v390
    %423 = vmatprep.subr.mxu0 0.0
    %424 = vmatpush1.msra.mxu0 %v391
    %425 = vmatprep.subr.mxu0 0.0
    %426 = vmatpush1.msra.mxu0 %v392
    %427 = vmatprep.subr.mxu0 0.0
    %428 = vmatpush1.msra.mxu0 0.0
    %429 = vmatprep.subr.mxu0 0.0
    %430 = vmatpush1.msra.mxu0 0.0
    %431 = vmatprep.subr.mxu0 0.0
    %432 = vmatpush1.msra.mxu0 0.0
    %433 = vmatprep.subr.mxu0 0.0
    %434 = vmatpush1.msra.mxu0 0.0
    %435 = vmatprep.subr.mxu0 0.0
    %436 = vmatpush1.msra.mxu0 0.0
    %437 = vmatprep.subr.mxu0 0.0
    %438 = vmatpush1.msra.mxu0 0.0
    %439 = vmatprep.subr.mxu0 0.0
    %440 = vmatpush1.msra.mxu0 0.0
    %441 = vmatprep.subr.mxu0 0.0
    %442 = vmatpush1.msra.mxu0 0.0
    %443 = vmatprep.subr.mxu0 0.0
    %444 = vmatpush1.msra.mxu0 0.0
    %445 = vmatprep.subr.mxu0 0.0
    %446 = vmatpush1.msra.mxu0 0.0
    %447 = vmatprep.subr.mxu0 0.0
    %448 = vmatpush1.msra.mxu0 0.0
    %449 = vmatprep.subr.mxu0 0.0
    %450 = vmatpush1.msra.mxu0 0.0
    %451 = vmatprep.subr.mxu0 0.0
    %452 = vmatpush1.msra.mxu0 0.0
    %453 = vmatprep.subr.mxu0 0.0
    %454 = vmatpush1.msra.mxu0 0.0
    %455 = vmatprep.subr.mxu0 0.0
    %456 = vmatpush1.msra.mxu0 0.0
    %457 = vmatprep.subr.mxu0 0.0
    %458 = vmatpush1.msra.mxu0 0.0
    %459 = vmatprep.mubr.f32.mxu0 0.0
    %460 = vmatmul.mubr.f32.gmra.mrb[0].mxu0 %v393
    %v461 = vpop.f32.mrb[0].mxu0
    %v462 = vadd.f32 1e-06, %v461
    %v463 = vpop.f32.mrb[0].mxu0
    %464 = vmatprep.mubr.f32.mxu0 0.0
    %465 = vmatmul.mubr.f32.gmra.mrb[0].mxu0 %v394
    %v466 = vpop.f32.mrb[0].mxu0
    %v467 = vadd.f32 1e-06, %v466
    %v468 = vpop.f32.mrb[0].mxu0
    %469 = vdwg.mxu0
    %v470 = vrsqrt.pop %v462
    %v471 = vrsqrt.pop %v467
    %v472 = vmul.f32 %v306, %v470
    %v473 = vmul.f32 %v307, %v471
    %v474 = vld [vmem:[%s5] sm:$0xff]
    %v475 = vld [vmem:[%s5 + $0x8] sm:$0xff]
    %v476 = vld [vmem:[%s5 + $0x10] sm:$0xff]
    %v477 = vld [vmem:[%s5 + $0x18] sm:$0xff]
    %v478 = vld [vmem:[%s5 + $0x20] sm:$0xff]
    %v479 = vld [vmem:[%s5 + $0x28] sm:$0xff]
    %v480 = vld [vmem:[%s5 + $0x30] sm:$0xff]
    %v481 = vld [vmem:[%s5 + $0x38] sm:$0xff]
    %v482 = vld [vmem:[%s5 + $0x40] sm:$0xff]
    %v483 = vld [vmem:[%s5 + $0x48] sm:$0xff]
    %v484 = vld [vmem:[%s5 + $0x50] sm:$0xff]
    %v485 = vld [vmem:[%s5 + $0x58] sm:$0xff]
    %v486 = vld [vmem:[%s5 + $0x60] sm:$0xff]
    %v487 = vld [vmem:[%s5 + $0x68] sm:$0xff]
    %v488 = vld [vmem:[%s5 + $0x70] sm:$0xff]
    %v489 = vld [vmem:[%s5 + $0x78] sm:$0xff]
    %v490 = vld [vmem:[%s5 + $0x80] sm:$0xff]
    %v491 = vld [vmem:[%s5 + $0x88] sm:$0xff]
    %v492 = vld [vmem:[%s5 + $0x90] sm:$0xff]
    %v493 = vld [vmem:[%s5 + $0x98] sm:$0xff]
    %v494 = vmul.f32 %v277, %v277
    %v495 = vmul.f32 %v283, %v283
    %v496 = vmul.f32 %v277, %v494
    %v497 = vmul.f32 %v283, %v495
    %v498 = vmul.f32 %v496, 0.044715
    %v499 = vmul.f32 %v497, 0.044715
    %v500 = vadd.f32 %v277, %v498
    %v501 = vadd.f32 %v283, %v499
    %v502 = vmul.f32 %v500, 0.7978846
    %v503 = vmul.f32 %v501, 0.7978846
    %v504 = vtanh.pop %v502
    %v505 = vtanh.pop %v503
    %v506 = vadd.f32 %v504, 1.0
    %v507 = vadd.f32 %v505, 1.0
    %v508 = vmul.f32 %v506, 0.5
    %v509 = vmul.f32 %v507, 0.5
    %v510 = vmul.f32 %v277, %v508
    %v511 = vmul.f32 %v283, %v509
    %v512 = vlaneseq
    %v513 = vshrl.u32 %v512, 7
    %v514 = vsub.s32 0, %v513
    %v515 = vrot.slane %v31, %v514
    %516 = vmatprep.subr.mxu0 0.0
    %517 = vmatpush1.msra.mxu0 %v478
    %518 = vmatprep.subr.mxu0 0.0
    %519 = vmatpush1.msra.mxu0 %v479
    %520 = vmatprep.subr.mxu0 0.0
    %521 = vmatpush1.msra.mxu0 %v480
    %522 = vmatprep.subr.mxu0 0.0
    %523 = vmatpush1.msra.mxu0 %v481
    %524 = vmatprep.subr.mxu0 0.0
    %525 = vmatpush1.msra.mxu0 %v482
    %526 = vmatprep.subr.mxu0 0.0
    %527 = vmatpush1.msra.mxu0 %v483
    %528 = vmatprep.subr.mxu0 0.0
    %529 = vmatpush1.msra.mxu0 %v484
    %530 = vmatprep.subr.mxu0 0.0
    %531 = vmatpush1.msra.mxu0 %v485
    %532 = vmatprep.subr.mxu0 0.0
    %533 = vmatpush1.msra.mxu0 %v486
    %534 = vmatprep.subr.mxu0 0.0
    %535 = vmatpush1.msra.mxu0 %v487
    %536 = vmatprep.subr.mxu0 0.0
    %537 = vmatpush1.msra.mxu0 %v488
    %538 = vmatprep.subr.mxu0 0.0
    %539 = vmatpush1.msra.mxu0 %v489
    %540 = vmatprep.subr.mxu0 0.0
    %541 = vmatpush1.msra.mxu0 %v490
    %542 = vmatprep.subr.mxu0 0.0
    %543 = vmatpush1.msra.mxu0 %v491
    %544 = vmatprep.subr.mxu0 0.0
    %545 = vmatpush1.msra.mxu0 %v492
    %546 = vmatprep.subr.mxu0 0.0
    %547 = vmatpush1.msra.mxu0 %v493
    %548 = vmatprep.subr.mxu0 0.0
    %549 = vmatpush1.msra.mxu0 0.0
    %550 = vmatprep.subr.mxu0 0.0
    %551 = vmatpush1.msra.mxu0 0.0
    %552 = vmatprep.subr.mxu0 0.0
    %553 = vmatpush1.msra.mxu0 0.0
    %554 = vmatprep.subr.mxu0 0.0
    %555 = vmatpush1.msra.mxu0 0.0
    %556 = vmatprep.subr.mxu0 0.0
    %557 = vmatpush1.msra.mxu0 0.0
    %558 = vmatprep.subr.mxu0 0.0
    %559 = vmatpush1.msra.mxu0 0.0
    %560 = vmatprep.subr.mxu0 0.0
    %561 = vmatpush1.msra.mxu0 0.0
    %562 = vmatprep.subr.mxu0 0.0
    %563 = vmatpush1.msra.mxu0 0.0
    %564 = vmatprep.subr.mxu0 0.0
    %565 = vmatpush1.msra.mxu0 0.0
    %566 = vmatprep.subr.mxu0 0.0
    %567 = vmatpush1.msra.mxu0 0.0
    %568 = vmatprep.subr.mxu0 0.0
    %569 = vmatpush1.msra.mxu0 0.0
    %570 = vmatprep.subr.mxu0 0.0
    %571 = vmatpush1.msra.mxu0 0.0
    %572 = vmatprep.subr.mxu0 0.0
    %573 = vmatpush1.msra.mxu0 0.0
    %574 = vmatprep.subr.mxu0 0.0
    %575 = vmatpush1.msra.mxu0 0.0
    %576 = vmatprep.subr.mxu0 0.0
    %577 = vmatpush1.msra.mxu0 0.0
    %578 = vmatprep.subr.mxu0 0.0
    %579 = vmatpush1.msra.mxu0 0.0
    %580 = vmatprep.mubr.f32.mxu0 0.0
    %581 = vmatmul.mubr.f32.gmra.mrb[0].mxu0 %v510
    %v582 = vpop.f32.mrb[0].mxu0
    %v583 = vadd.f32 %v515, %v582
    %v584 = vpop.f32.mrb[0].mxu0
    %585 = vmatprep.mubr.f32.mxu0 0.0
    %586 = vmatmul.mubr.f32.gmra.mrb[0].mxu0 %v511
    %v587 = vpop.f32.mrb[0].mxu0
    %v588 = vadd.f32 %v515, %v587
    %v589 = vpop.f32.mrb[0].mxu0
    %590 = vdwg.mxu0
    %v591 = vshra.s32 %v309, 3
    %v592 = vshra.s32 %v310, 3
    %v593 = vshra.s32 %v326, 3
    %vm594 = vcmp.eq.s32.totalorder %v591, %v593
    %vm595 = vcmp.eq.s32.totalorder %v592, %v593
    %v596 = vsel %vm594, 0.0, -1e+30
    %v597 = vsel %vm595, 0.0, -1e+30
    %600 = vrot.lane.b32.xlu0 %v472, 96
    %v601 = vpop.permute.xlu0 %600
    %602 = vrot.lane.b32.xlu0 %v473, 96
    %v603 = vpop.permute.xlu0 %602
    %vm604 = vcmask 130048
    %v605 = vsel %vm604, %v472, 0
    %v607 = vsel %vm604, %v473, 0
    %v609 = vsel %vm604, %v601, 0
    %v611 = vsel %vm604, %v603, 0
    %613 = vmatprep.subr.mxu0 0.0
    %614 = vmatpush1.xpose.msra.mxu0 %v609
    %615 = vmatprep.subr.mxu0 0.0
    %616 = vmatpush1.xpose.msra.mxu0 %v611
    %617 = vmatprep.subr.mxu0 0.0
    %618 = vmatpush1.xpose.msra.mxu0 0.0
    %619 = vmatprep.subr.mxu0 0.0
    %620 = vmatpush1.xpose.msra.mxu0 0.0
    %621 = vmatprep.subr.mxu0 0.0
    %622 = vmatpush1.xpose.msra.mxu0 0.0
    %623 = vmatprep.subr.mxu0 0.0
    %624 = vmatpush1.xpose.msra.mxu0 0.0
    %625 = vmatprep.subr.mxu0 0.0
    %626 = vmatpush1.xpose.msra.mxu0 0.0
    %627 = vmatprep.subr.mxu0 0.0
    %628 = vmatpush1.xpose.msra.mxu0 0.0
    %629 = vmatprep.subr.mxu0 0.0
    %630 = vmatpush1.xpose.msra.mxu0 0.0
    %631 = vmatprep.subr.mxu0 0.0
    %632 = vmatpush1.xpose.msra.mxu0 0.0
    %633 = vmatprep.subr.mxu0 0.0
    %634 = vmatpush1.xpose.msra.mxu0 0.0
    %635 = vmatprep.subr.mxu0 0.0
    %636 = vmatpush1.xpose.msra.mxu0 0.0
    %637 = vmatprep.subr.mxu0 0.0
    %638 = vmatpush1.xpose.msra.mxu0 0.0
    %639 = vmatprep.subr.mxu0 0.0
    %640 = vmatpush1.xpose.msra.mxu0 0.0
    %641 = vmatprep.subr.mxu0 0.0
    %642 = vmatpush1.xpose.msra.mxu0 0.0
    %643 = vmatprep.subr.mxu0 0.0
    %644 = vmatpush1.xpose.msra.mxu0 0.0
    %645 = vmatprep.subr.mxu0 0.0
    %646 = vmatpush1.xpose.msra.mxu0 0.0
    %647 = vmatprep.subr.mxu0 0.0
    %648 = vmatpush1.xpose.msra.mxu0 0.0
    %649 = vmatprep.subr.mxu0 0.0
    %650 = vmatpush1.xpose.msra.mxu0 0.0
    %651 = vmatprep.subr.mxu0 0.0
    %652 = vmatpush1.xpose.msra.mxu0 0.0
    %653 = vmatprep.subr.mxu0 0.0
    %654 = vmatpush1.xpose.msra.mxu0 0.0
    %655 = vmatprep.subr.mxu0 0.0
    %656 = vmatpush1.xpose.msra.mxu0 0.0
    %657 = vmatprep.subr.mxu0 0.0
    %658 = vmatpush1.xpose.msra.mxu0 0.0
    %659 = vmatprep.subr.mxu0 0.0
    %660 = vmatpush1.xpose.msra.mxu0 0.0
    %661 = vmatprep.subr.mxu0 0.0
    %662 = vmatpush1.xpose.msra.mxu0 0.0
    %663 = vmatprep.subr.mxu0 0.0
    %664 = vmatpush1.xpose.msra.mxu0 0.0
    %665 = vmatprep.subr.mxu0 0.0
    %666 = vmatpush1.xpose.msra.mxu0 0.0
    %667 = vmatprep.subr.mxu0 0.0
    %668 = vmatpush1.xpose.msra.mxu0 0.0
    %669 = vmatprep.subr.mxu0 0.0
    %670 = vmatpush1.xpose.msra.mxu0 0.0
    %671 = vmatprep.subr.mxu0 0.0
    %672 = vmatpush1.xpose.msra.mxu0 0.0
    %673 = vmatprep.subr.mxu0 0.0
    %674 = vmatpush1.xpose.msra.mxu0 0.0
    %675 = vmatprep.subr.mxu0 0.0
    %676 = vmatpush1.xpose.msra.mxu0 0.0
    %677 = vmatprep.mubr.f32.mxu0 0.0
    %678 = vmatmul.mubr.f32.gmra.mrb[0].mxu0 %v605
    %v679 = vpop.f32.mrb[0].mxu0
    %v680 = vadd.f32 %v596, %v679
    %v681 = vpop.f32.mrb[0].mxu0
    %682 = vmatprep.mubr.f32.mxu0 0.0
    %683 = vmatmul.mubr.f32.gmra.mrb[0].mxu0 %v607
    %v684 = vpop.f32.mrb[0].mxu0
    %v685 = vadd.f32 %v597, %v684
    %v686 = vpop.f32.mrb[0].mxu0
    %687 = vdwg.mxu0
    %v688 = vsel %vm604, %v680, -inf
    %689 = vmax.xlane.f32.xlu0 %v688
    %v690 = vpop.xlane.xlu0 %689
    %v691 = vsel %vm604, %v685, -inf
    %692 = vmax.xlane.f32.xlu0 %v691
    %v693 = vpop.xlane.xlu0 %692
    %v694 = vsub.f32 %v680, %v690
    %v695 = vsub.f32 %v685, %v693
    %v696 = vmul.f32 %v694, 1.442695
    %v697 = vpow.pop %v696
    %v698 = vmul.f32 %v695, 1.442695
    %v699 = vpow.pop %v698
    %v700 = vsel %vm604, %v697, 0.0
    %701 = vadd.xlane.f32.xlu0 %v700
    %v702 = vpop.xlane.xlu0 %701
    %v703 = vsel %vm604, %v699, 0.0
    %704 = vadd.xlane.f32.xlu0 %v703
    %v705 = vpop.xlane.xlu0 %704
    %v706 = vrcp.pop %v702
    %v707 = vmul.f32 %v697, %v706
    %v708 = vrcp.pop %v705
    %v709 = vmul.f32 %v699, %v708
    %712 = vrot.lane.b32.xlu0 %v275, 64
    %v713 = vpop.permute.xlu0 %712
    %714 = vrot.lane.b32.xlu0 %v281, 64
    %v715 = vpop.permute.xlu0 %714
    %v719 = vsel %vm604, %v707, 0
    %v722 = vsel %vm604, %v709, 0
    %724 = vmatprep.subr.mxu0 0.0
    %725 = vmatpush1.msra.mxu0 %v713
    %726 = vmatprep.subr.mxu0 0.0
    %727 = vmatpush1.msra.mxu0 %v715
    %728 = vmatprep.subr.mxu0 0.0
    %729 = vmatpush1.msra.mxu0 0.0
    %730 = vmatprep.subr.mxu0 0.0
    %731 = vmatpush1.msra.mxu0 0.0
    %732 = vmatprep.subr.mxu0 0.0
    %733 = vmatpush1.msra.mxu0 0.0
    %734 = vmatprep.subr.mxu0 0.0
    %735 = vmatpush1.msra.mxu0 0.0
    %736 = vmatprep.subr.mxu0 0.0
    %737 = vmatpush1.msra.mxu0 0.0
    %738 = vmatprep.subr.mxu0 0.0
    %739 = vmatpush1.msra.mxu0 0.0
    %740 = vmatprep.subr.mxu0 0.0
    %741 = vmatpush1.msra.mxu0 0.0
    %742 = vmatprep.subr.mxu0 0.0
    %743 = vmatpush1.msra.mxu0 0.0
    %744 = vmatprep.subr.mxu0 0.0
    %745 = vmatpush1.msra.mxu0 0.0
    %746 = vmatprep.subr.mxu0 0.0
    %747 = vmatpush1.msra.mxu0 0.0
    %748 = vmatprep.subr.mxu0 0.0
    %749 = vmatpush1.msra.mxu0 0.0
    %750 = vmatprep.subr.mxu0 0.0
    %751 = vmatpush1.msra.mxu0 0.0
    %752 = vmatprep.subr.mxu0 0.0
    %753 = vmatpush1.msra.mxu0 0.0
    %754 = vmatprep.subr.mxu0 0.0
    %755 = vmatpush1.msra.mxu0 0.0
    %756 = vmatprep.subr.mxu0 0.0
    %757 = vmatpush1.msra.mxu0 0.0
    %758 = vmatprep.subr.mxu0 0.0
    %759 = vmatpush1.msra.mxu0 0.0
    %760 = vmatprep.subr.mxu0 0.0
    %761 = vmatpush1.msra.mxu0 0.0
    %762 = vmatprep.subr.mxu0 0.0
    %763 = vmatpush1.msra.mxu0 0.0
    %764 = vmatprep.subr.mxu0 0.0
    %765 = vmatpush1.msra.mxu0 0.0
    %766 = vmatprep.subr.mxu0 0.0
    %767 = vmatpush1.msra.mxu0 0.0
    %768 = vmatprep.subr.mxu0 0.0
    %769 = vmatpush1.msra.mxu0 0.0
    %770 = vmatprep.subr.mxu0 0.0
    %771 = vmatpush1.msra.mxu0 0.0
    %772 = vmatprep.subr.mxu0 0.0
    %773 = vmatpush1.msra.mxu0 0.0
    %774 = vmatprep.subr.mxu0 0.0
    %775 = vmatpush1.msra.mxu0 0.0
    %776 = vmatprep.subr.mxu0 0.0
    %777 = vmatpush1.msra.mxu0 0.0
    %778 = vmatprep.subr.mxu0 0.0
    %779 = vmatpush1.msra.mxu0 0.0
    %780 = vmatprep.subr.mxu0 0.0
    %781 = vmatpush1.msra.mxu0 0.0
    %782 = vmatprep.subr.mxu0 0.0
    %783 = vmatpush1.msra.mxu0 0.0
    %784 = vmatprep.subr.mxu0 0.0
    %785 = vmatpush1.msra.mxu0 0.0
    %786 = vmatprep.subr.mxu0 0.0
    %787 = vmatpush1.msra.mxu0 0.0
    %788 = vmatprep.mubr.f32.mxu0 0.0
    %789 = vmatmul.mubr.f32.gmra.mrb[0].mxu0 %v719
    %v790 = vpop.f32.mrb[0].mxu0
    %v791 = vadd.f32 0.0, %v790
    %v792 = vpop.f32.mrb[0].mxu0
    %793 = vmatprep.mubr.f32.mxu0 0.0
    %794 = vmatmul.mubr.f32.gmra.mrb[0].mxu0 %v722
    %v795 = vpop.f32.mrb[0].mxu0
    %v796 = vadd.f32 0.0, %v795
    %v797 = vpop.f32.mrb[0].mxu0
    %798 = vdwg.mxu0
    %v800 = vsel %vm604, %v791, 0
    %v803 = vsel %vm604, %v796, 0
    %805 = vmatprep.subr.mxu0 0.0
    %806 = vmatpush1.msra.mxu0 %v474
    %807 = vmatprep.subr.mxu0 0.0
    %808 = vmatpush1.msra.mxu0 %v475
    %809 = vmatprep.subr.mxu0 0.0
    %810 = vmatpush1.msra.mxu0 0.0
    %811 = vmatprep.subr.mxu0 0.0
    %812 = vmatpush1.msra.mxu0 0.0
    %813 = vmatprep.subr.mxu0 0.0
    %814 = vmatpush1.msra.mxu0 0.0
    %815 = vmatprep.subr.mxu0 0.0
    %816 = vmatpush1.msra.mxu0 0.0
    %817 = vmatprep.subr.mxu0 0.0
    %818 = vmatpush1.msra.mxu0 0.0
    %819 = vmatprep.subr.mxu0 0.0
    %820 = vmatpush1.msra.mxu0 0.0
    %821 = vmatprep.subr.mxu0 0.0
    %822 = vmatpush1.msra.mxu0 0.0
    %823 = vmatprep.subr.mxu0 0.0
    %824 = vmatpush1.msra.mxu0 0.0
    %825 = vmatprep.subr.mxu0 0.0
    %826 = vmatpush1.msra.mxu0 0.0
    %827 = vmatprep.subr.mxu0 0.0
    %828 = vmatpush1.msra.mxu0 0.0
    %829 = vmatprep.subr.mxu0 0.0
    %830 = vmatpush1.msra.mxu0 0.0
    %831 = vmatprep.subr.mxu0 0.0
    %832 = vmatpush1.msra.mxu0 0.0
    %833 = vmatprep.subr.mxu0 0.0
    %834 = vmatpush1.msra.mxu0 0.0
    %835 = vmatprep.subr.mxu0 0.0
    %836 = vmatpush1.msra.mxu0 0.0
    %837 = vmatprep.subr.mxu0 0.0
    %838 = vmatpush1.msra.mxu0 0.0
    %839 = vmatprep.subr.mxu0 0.0
    %840 = vmatpush1.msra.mxu0 0.0
    %841 = vmatprep.subr.mxu0 0.0
    %842 = vmatpush1.msra.mxu0 0.0
    %843 = vmatprep.subr.mxu0 0.0
    %844 = vmatpush1.msra.mxu0 0.0
    %845 = vmatprep.subr.mxu0 0.0
    %846 = vmatpush1.msra.mxu0 0.0
    %847 = vmatprep.subr.mxu0 0.0
    %848 = vmatpush1.msra.mxu0 0.0
    %849 = vmatprep.subr.mxu0 0.0
    %850 = vmatpush1.msra.mxu0 0.0
    %851 = vmatprep.subr.mxu0 0.0
    %852 = vmatpush1.msra.mxu0 0.0
    %853 = vmatprep.subr.mxu0 0.0
    %854 = vmatpush1.msra.mxu0 0.0
    %855 = vmatprep.subr.mxu0 0.0
    %856 = vmatpush1.msra.mxu0 0.0
    %857 = vmatprep.subr.mxu0 0.0
    %858 = vmatpush1.msra.mxu0 0.0
    %859 = vmatprep.subr.mxu0 0.0
    %860 = vmatpush1.msra.mxu0 0.0
    %861 = vmatprep.subr.mxu0 0.0
    %862 = vmatpush1.msra.mxu0 0.0
    %863 = vmatprep.subr.mxu0 0.0
    %864 = vmatpush1.msra.mxu0 0.0
    %865 = vmatprep.subr.mxu0 0.0
    %866 = vmatpush1.msra.mxu0 0.0
    %867 = vmatprep.subr.mxu0 0.0
    %868 = vmatpush1.msra.mxu0 0.0
    %869 = vmatprep.mubr.f32.mxu0 0.0
    %870 = vmatmul.mubr.f32.gmra.mrb[0].mxu0 %v800
    %v871 = vpop.f32.mrb[0].mxu0
    %v872 = vadd.f32 0.0, %v871
    %v873 = vpop.f32.mrb[0].mxu0
    %874 = vmatprep.mubr.f32.mxu0 0.0
    %875 = vmatmul.mubr.f32.gmra.mrb[0].mxu0 %v803
    %v876 = vpop.f32.mrb[0].mxu0
    %v877 = vadd.f32 0.0, %v876
    %v878 = vpop.f32.mrb[0].mxu0
    %879 = vdwg.mxu0
    %v880 = vadd.f32 %v583, %v872
    %v881 = vadd.f32 %v588, %v877
    %882 = vrot.lane.b32.xlu0 %v472, 112
    %v883 = vpop.permute.xlu0 %882
    %884 = vrot.lane.b32.xlu0 %v473, 112
    %v885 = vpop.permute.xlu0 %884
    %886 = vrot.lane.b32.xlu0 %v472, 80
    %v887 = vpop.permute.xlu0 %886
    %888 = vrot.lane.b32.xlu0 %v473, 80
    %v889 = vpop.permute.xlu0 %888
    %v890 = vsel %vm604, %v883, 0
    %v892 = vsel %vm604, %v885, 0
    %v894 = vsel %vm604, %v887, 0
    %v896 = vsel %vm604, %v889, 0
    %898 = vmatprep.subr.mxu0 0.0
    %899 = vmatpush1.xpose.msra.mxu0 %v894
    %900 = vmatprep.subr.mxu0 0.0
    %901 = vmatpush1.xpose.msra.mxu0 %v896
    %902 = vmatprep.subr.mxu0 0.0
    %903 = vmatpush1.xpose.msra.mxu0 0.0
    %904 = vmatprep.subr.mxu0 0.0
    %905 = vmatpush1.xpose.msra.mxu0 0.0
    %906 = vmatprep.subr.mxu0 0.0
    %907 = vmatpush1.xpose.msra.mxu0 0.0
    %908 = vmatprep.subr.mxu0 0.0
    %909 = vmatpush1.xpose.msra.mxu0 0.0
    %910 = vmatprep.subr.mxu0 0.0
    %911 = vmatpush1.xpose.msra.mxu0 0.0
    %912 = vmatprep.subr.mxu0 0.0
    %913 = vmatpush1.xpose.msra.mxu0 0.0
    %914 = vmatprep.subr.mxu0 0.0
    %915 = vmatpush1.xpose.msra.mxu0 0.0
    %916 = vmatprep.subr.mxu0 0.0
    %917 = vmatpush1.xpose.msra.mxu0 0.0
    %918 = vmatprep.subr.mxu0 0.0
    %919 = vmatpush1.xpose.msra.mxu0 0.0
    %920 = vmatprep.subr.mxu0 0.0
    %921 = vmatpush1.xpose.msra.mxu0 0.0
    %922 = vmatprep.subr.mxu0 0.0
    %923 = vmatpush1.xpose.msra.mxu0 0.0
    %924 = vmatprep.subr.mxu0 0.0
    %925 = vmatpush1.xpose.msra.mxu0 0.0
    %926 = vmatprep.subr.mxu0 0.0
    %927 = vmatpush1.xpose.msra.mxu0 0.0
    %928 = vmatprep.subr.mxu0 0.0
    %929 = vmatpush1.xpose.msra.mxu0 0.0
    %930 = vmatprep.subr.mxu0 0.0
    %931 = vmatpush1.xpose.msra.mxu0 0.0
    %932 = vmatprep.subr.mxu0 0.0
    %933 = vmatpush1.xpose.msra.mxu0 0.0
    %934 = vmatprep.subr.mxu0 0.0
    %935 = vmatpush1.xpose.msra.mxu0 0.0
    %936 = vmatprep.subr.mxu0 0.0
    %937 = vmatpush1.xpose.msra.mxu0 0.0
    %938 = vmatprep.subr.mxu0 0.0
    %939 = vmatpush1.xpose.msra.mxu0 0.0
    %940 = vmatprep.subr.mxu0 0.0
    %941 = vmatpush1.xpose.msra.mxu0 0.0
    %942 = vmatprep.subr.mxu0 0.0
    %943 = vmatpush1.xpose.msra.mxu0 0.0
    %944 = vmatprep.subr.mxu0 0.0
    %945 = vmatpush1.xpose.msra.mxu0 0.0
    %946 = vmatprep.subr.mxu0 0.0
    %947 = vmatpush1.xpose.msra.mxu0 0.0
    %948 = vmatprep.subr.mxu0 0.0
    %949 = vmatpush1.xpose.msra.mxu0 0.0
    %950 = vmatprep.subr.mxu0 0.0
    %951 = vmatpush1.xpose.msra.mxu0 0.0
    %952 = vmatprep.subr.mxu0 0.0
    %953 = vmatpush1.xpose.msra.mxu0 0.0
    %954 = vmatprep.subr.mxu0 0.0
    %955 = vmatpush1.xpose.msra.mxu0 0.0
    %956 = vmatprep.subr.mxu0 0.0
    %957 = vmatpush1.xpose.msra.mxu0 0.0
    %958 = vmatprep.subr.mxu0 0.0
    %959 = vmatpush1.xpose.msra.mxu0 0.0
    %960 = vmatprep.subr.mxu0 0.0
    %961 = vmatpush1.xpose.msra.mxu0 0.0
    %962 = vmatprep.mubr.f32.mxu0 0.0
    %963 = vmatmul.mubr.f32.gmra.mrb[0].mxu0 %v890
    %v964 = vpop.f32.mrb[0].mxu0
    %v965 = vadd.f32 %v596, %v964
    %v966 = vpop.f32.mrb[0].mxu0
    %967 = vmatprep.mubr.f32.mxu0 0.0
    %968 = vmatmul.mubr.f32.gmra.mrb[0].mxu0 %v892
    %v969 = vpop.f32.mrb[0].mxu0
    %v970 = vadd.f32 %v597, %v969
    %v971 = vpop.f32.mrb[0].mxu0
    %972 = vdwg.mxu0
    %v973 = vsel %vm604, %v965, -inf
    %974 = vmax.xlane.f32.xlu0 %v973
    %v975 = vpop.xlane.xlu0 %974
    %v976 = vsel %vm604, %v970, -inf
    %977 = vmax.xlane.f32.xlu0 %v976
    %v978 = vpop.xlane.xlu0 %977
    %v979 = vsub.f32 %v965, %v975
    %v980 = vsub.f32 %v970, %v978
    %v981 = vmul.f32 %v979, 1.442695
    %v982 = vpow.pop %v981
    %v983 = vmul.f32 %v980, 1.442695
    %v984 = vpow.pop %v983
    %v985 = vsel %vm604, %v982, 0.0
    %986 = vadd.xlane.f32.xlu0 %v985
    %v987 = vpop.xlane.xlu0 %986
    %v988 = vsel %vm604, %v984, 0.0
    %989 = vadd.xlane.f32.xlu0 %v988
    %v990 = vpop.xlane.xlu0 %989
    %v991 = vrcp.pop %v987
    %v992 = vmul.f32 %v982, %v991
    %v993 = vrcp.pop %v990
    %v994 = vmul.f32 %v984, %v993
    %995 = vrot.lane.b32.xlu0 %v275, 48
    %v996 = vpop.permute.xlu0 %995
    %997 = vrot.lane.b32.xlu0 %v281, 48
    %v998 = vpop.permute.xlu0 %997
    %v1002 = vsel %vm604, %v992, 0
    %v1005 = vsel %vm604, %v994, 0
    %1007 = vmatprep.subr.mxu0 0.0
    %1008 = vmatpush1.msra.mxu0 %v996
    %1009 = vmatprep.subr.mxu0 0.0
    %1010 = vmatpush1.msra.mxu0 %v998
    %1011 = vmatprep.subr.mxu0 0.0
    %1012 = vmatpush1.msra.mxu0 0.0
    %1013 = vmatprep.subr.mxu0 0.0
    %1014 = vmatpush1.msra.mxu0 0.0
    %1015 = vmatprep.subr.mxu0 0.0
    %1016 = vmatpush1.msra.mxu0 0.0
    %1017 = vmatprep.subr.mxu0 0.0
    %1018 = vmatpush1.msra.mxu0 0.0
    %1019 = vmatprep.subr.mxu0 0.0
    %1020 = vmatpush1.msra.mxu0 0.0
    %1021 = vmatprep.subr.mxu0 0.0
    %1022 = vmatpush1.msra.mxu0 0.0
    %1023 = vmatprep.subr.mxu0 0.0
    %1024 = vmatpush1.msra.mxu0 0.0
    %1025 = vmatprep.subr.mxu0 0.0
    %1026 = vmatpush1.msra.mxu0 0.0
    %1027 = vmatprep.subr.mxu0 0.0
    %1028 = vmatpush1.msra.mxu0 0.0
    %1029 = vmatprep.subr.mxu0 0.0
    %1030 = vmatpush1.msra.mxu0 0.0
    %1031 = vmatprep.subr.mxu0 0.0
    %1032 = vmatpush1.msra.mxu0 0.0
    %1033 = vmatprep.subr.mxu0 0.0
    %1034 = vmatpush1.msra.mxu0 0.0
    %1035 = vmatprep.subr.mxu0 0.0
    %1036 = vmatpush1.msra.mxu0 0.0
    %1037 = vmatprep.subr.mxu0 0.0
    %1038 = vmatpush1.msra.mxu0 0.0
    %1039 = vmatprep.subr.mxu0 0.0
    %1040 = vmatpush1.msra.mxu0 0.0
    %1041 = vmatprep.subr.mxu0 0.0
    %1042 = vmatpush1.msra.mxu0 0.0
    %1043 = vmatprep.subr.mxu0 0.0
    %1044 = vmatpush1.msra.mxu0 0.0
    %1045 = vmatprep.subr.mxu0 0.0
    %1046 = vmatpush1.msra.mxu0 0.0
    %1047 = vmatprep.subr.mxu0 0.0
    %1048 = vmatpush1.msra.mxu0 0.0
    %1049 = vmatprep.subr.mxu0 0.0
    %1050 = vmatpush1.msra.mxu0 0.0
    %1051 = vmatprep.subr.mxu0 0.0
    %1052 = vmatpush1.msra.mxu0 0.0
    %1053 = vmatprep.subr.mxu0 0.0
    %1054 = vmatpush1.msra.mxu0 0.0
    %1055 = vmatprep.subr.mxu0 0.0
    %1056 = vmatpush1.msra.mxu0 0.0
    %1057 = vmatprep.subr.mxu0 0.0
    %1058 = vmatpush1.msra.mxu0 0.0
    %1059 = vmatprep.subr.mxu0 0.0
    %1060 = vmatpush1.msra.mxu0 0.0
    %1061 = vmatprep.subr.mxu0 0.0
    %1062 = vmatpush1.msra.mxu0 0.0
    %1063 = vmatprep.subr.mxu0 0.0
    %1064 = vmatpush1.msra.mxu0 0.0
    %1065 = vmatprep.subr.mxu0 0.0
    %1066 = vmatpush1.msra.mxu0 0.0
    %1067 = vmatprep.subr.mxu0 0.0
    %1068 = vmatpush1.msra.mxu0 0.0
    %1069 = vmatprep.subr.mxu0 0.0
    %1070 = vmatpush1.msra.mxu0 0.0
    %1071 = vmatprep.mubr.f32.mxu0 0.0
    %1072 = vmatmul.mubr.f32.gmra.mrb[0].mxu0 %v1002
    %v1073 = vpop.f32.mrb[0].mxu0
    %v1074 = vadd.f32 0.0, %v1073
    %v1075 = vpop.f32.mrb[0].mxu0
    %1076 = vmatprep.mubr.f32.mxu0 0.0
    %1077 = vmatmul.mubr.f32.gmra.mrb[0].mxu0 %v1005
    %v1078 = vpop.f32.mrb[0].mxu0
    %v1079 = vadd.f32 0.0, %v1078
    %v1080 = vpop.f32.mrb[0].mxu0
    %1081 = vdwg.mxu0
    %v1083 = vsel %vm604, %v1074, 0
    %v1086 = vsel %vm604, %v1079, 0
    %1088 = vmatprep.subr.mxu0 0.0
    %1089 = vmatpush1.msra.mxu0 %v476
    %1090 = vmatprep.subr.mxu0 0.0
    %1091 = vmatpush1.msra.mxu0 %v477
    %1092 = vmatprep.subr.mxu0 0.0
    %1093 = vmatpush1.msra.mxu0 0.0
    %1094 = vmatprep.subr.mxu0 0.0
    %1095 = vmatpush1.msra.mxu0 0.0
    %1096 = vmatprep.subr.mxu0 0.0
    %1097 = vmatpush1.msra.mxu0 0.0
    %1098 = vmatprep.subr.mxu0 0.0
    %1099 = vmatpush1.msra.mxu0 0.0
    %1100 = vmatprep.subr.mxu0 0.0
    %1101 = vmatpush1.msra.mxu0 0.0
    %1102 = vmatprep.subr.mxu0 0.0
    %1103 = vmatpush1.msra.mxu0 0.0
    %1104 = vmatprep.subr.mxu0 0.0
    %1105 = vmatpush1.msra.mxu0 0.0
    %1106 = vmatprep.subr.mxu0 0.0
    %1107 = vmatpush1.msra.mxu0 0.0
    %1108 = vmatprep.subr.mxu0 0.0
    %1109 = vmatpush1.msra.mxu0 0.0
    %1110 = vmatprep.subr.mxu0 0.0
    %1111 = vmatpush1.msra.mxu0 0.0
    %1112 = vmatprep.subr.mxu0 0.0
    %1113 = vmatpush1.msra.mxu0 0.0
    %1114 = vmatprep.subr.mxu0 0.0
    %1115 = vmatpush1.msra.mxu0 0.0
    %1116 = vmatprep.subr.mxu0 0.0
    %1117 = vmatpush1.msra.mxu0 0.0
    %1118 = vmatprep.subr.mxu0 0.0
    %1119 = vmatpush1.msra.mxu0 0.0
    %1120 = vmatprep.subr.mxu0 0.0
    %1121 = vmatpush1.msra.mxu0 0.0
    %1122 = vmatprep.subr.mxu0 0.0
    %1123 = vmatpush1.msra.mxu0 0.0
    %1124 = vmatprep.subr.mxu0 0.0
    %1125 = vmatpush1.msra.mxu0 0.0
    %1126 = vmatprep.subr.mxu0 0.0
    %1127 = vmatpush1.msra.mxu0 0.0
    %1128 = vmatprep.subr.mxu0 0.0
    %1129 = vmatpush1.msra.mxu0 0.0
    %1130 = vmatprep.subr.mxu0 0.0
    %1131 = vmatpush1.msra.mxu0 0.0
    %1132 = vmatprep.subr.mxu0 0.0
    %1133 = vmatpush1.msra.mxu0 0.0
    %1134 = vmatprep.subr.mxu0 0.0
    %1135 = vmatpush1.msra.mxu0 0.0
    %1136 = vmatprep.subr.mxu0 0.0
    %1137 = vmatpush1.msra.mxu0 0.0
    %1138 = vmatprep.subr.mxu0 0.0
    %1139 = vmatpush1.msra.mxu0 0.0
    %1140 = vmatprep.subr.mxu0 0.0
    %1141 = vmatpush1.msra.mxu0 0.0
    %1142 = vmatprep.subr.mxu0 0.0
    %1143 = vmatpush1.msra.mxu0 0.0
    %1144 = vmatprep.subr.mxu0 0.0
    %1145 = vmatpush1.msra.mxu0 0.0
    %1146 = vmatprep.subr.mxu0 0.0
    %1147 = vmatpush1.msra.mxu0 0.0
    %1148 = vmatprep.subr.mxu0 0.0
    %1149 = vmatpush1.msra.mxu0 0.0
    %1150 = vmatprep.subr.mxu0 0.0
    %1151 = vmatpush1.msra.mxu0 0.0
    %1152 = vmatprep.mubr.f32.mxu0 0.0
    %1153 = vmatmul.mubr.f32.gmra.mrb[0].mxu0 %v1083
    %v1154 = vpop.f32.mrb[0].mxu0
    %v1155 = vadd.f32 0.0, %v1154
    %v1156 = vpop.f32.mrb[0].mxu0
    %1157 = vmatprep.mubr.f32.mxu0 0.0
    %1158 = vmatmul.mubr.f32.gmra.mrb[0].mxu0 %v1086
    %v1159 = vpop.f32.mrb[0].mxu0
    %v1160 = vadd.f32 0.0, %v1159
    %v1161 = vpop.f32.mrb[0].mxu0
    %1162 = vdwg.mxu0
    %v1163 = vadd.f32 %v880, %v1155
    %v1164 = vadd.f32 %v881, %v1160
    %1167 = vrot.lane.b32.xlu0 %v1163, 64
    %v1168 = vpop.permute.xlu0 %1167
    %1169 = vrot.lane.b32.xlu0 %v1164, 64
    %v1170 = vpop.permute.xlu0 %1169
    %v1173 = vmul.f32 %v125, %v1168
    %v1174 = vmul.f32 %v129, %v1170
    %1177 = vrot.lane.b32.xlu0 %v1173, 64
    %v1178 = vpop.permute.xlu0 %1177
    %1179 = vrot.lane.b32.xlu0 %v1174, 64
    %v1180 = vpop.permute.xlu0 %1179
    %v1183 = vadd.f32 %v27, %v1178
    %v1184 = vadd.f32 %v28, %v1180
    %1185 = vst.msk [vmem:[#allocation2] sm:$0xff] %vm48, %v1183
    %1186 = vst.msk [vmem:[#allocation2 + $0x8] sm:$0xff] %vm48, %v1184
    // Predicated region
    $region30: #{single_stream_forward.1} parent=1 // pred_check
      _
    $region31: #{single_stream_forward.1} parent=1 // pred_check_branch
      %1188 = sbr.rel (0) target = $region33
    $region32: #{single_stream_forward.1} parent=1 // pred_region
      %s1190 = ssub.s32 256, 256
      %1191 = vsyncadd [#allocation3], %s1190
      %s1192 = sshll.u32 [#allocation2], 4
      %s1193 = int_to_ptr.vmem [resolvable:$true] %s1192
      %1198 = dma.vmem_to_hbm [thread:$0]  %s1193, 256, %s7, [#allocation3], 128, 128, 8
    $region33: #{single_stream_forward.1} parent=1 // pred_fallthru
      _
    // Predicated region
    $region34: #{single_stream_forward.1} parent=1 // pred_check
      _
    $region35: #{single_stream_forward.1} parent=1 // pred_check_branch
      %1200 = sbr.rel (0) target = $region37
    $region36: #{single_stream_forward.1} parent=1 // pred_region
      %1201 = dma.done [#allocation3], 256
    $region37: #{single_stream_forward.1} parent=1 // pred_fallthru
      _
    %1202 = vsyncpa [#allocation3], 1

</llo_original>
